<compile_context>
chip_gen: v5e
topology: v5e:2x2
jax: 0.10.0
libtpu: 0.0.40
codegen_flags: <defaults>
</compile_context>

<pallas_src>
import jax
import jax.numpy as jnp
from jax.experimental import pallas as pl
from jax.experimental.pallas import tpu as pltpu


def make_bigru_kernel(B, T, D_in, H, num_layers, out_dim):
    f32 = jnp.float32
    H2, H3, H6 = 2 * H, 3 * H, 6 * H
    B2 = 2 * B

    def kernel(*refs):
        x_ref = refs[0]
        layer_refs = []
        idx = 1
        for _ in range(num_layers):
            layer_refs.append(refs[idx:idx + 4])      # wih, whh, bih, bhn
            idx += 4
        fcw_ref, fcb_ref = refs[idx], refs[idx + 1]
        out_ref = refs[idx + 2]
        scratch_refs = refs[idx + 3:]                 # (num_layers-1) x (T*B, 2H) VMEM scratch

        # Hoisted constant: mask that re-embeds the (2B, H) direction-batched state into the
        # zero-padded (2B, 2H) layout required by the block-diagonal whh matmul.
        ones_bh = jnp.ones((B, H), f32)
        zeros_bh = jnp.zeros((B, H), f32)
        pad_mask = jnp.concatenate(
            [jnp.concatenate([ones_bh, zeros_bh], axis=-1),
             jnp.concatenate([zeros_bh, ones_bh], axis=-1)], axis=0)   # (2B, 2H)

        flat = x_ref[...]                             # (T*B, in_dim), time-major (row = t*B + b)
        last_fwd = None
        last_bwd = None

        for l in range(num_layers):
            wih_ref, whh_ref, bih_ref, bhn_ref = layer_refs[l]
            is_top = (l == num_layers - 1)
            collect = None if is_top else scratch_refs[l]

            # ---- off the serial chain: ONE merged input projection per layer -------------
            # (T*B, in) @ (in, 6H); 192 lanes = 1 pass on v6e/v7x, 2 column passes on v5e.
            gi = jnp.dot(flat, wih_ref[...], preferred_element_type=f32) + bih_ref[...]
            gi_f = gi[:, 0:H3]                        # (T*B, 3H) forward-direction gates r|z|n
            gi_b = gi[:, H3:H6]                       # (T*B, 3H) backward-direction gates r|z|n

            whh = whh_ref[...]                        # (2H, 3H): rows 0:H fwd, H:2H bwd
            b_hn = jnp.concatenate(                   # (2B, H), hoisted out of the loop
                [jnp.broadcast_to(bhn_ref[0:1, :], (B, H)),
                 jnp.broadcast_to(bhn_ref[1:2, :], (B, H))], axis=0)

            # ---- serial recurrent chain: T direction-batched steps ------------------------
            h = None                                  # (2B, H): rows 0:B fwd state, B:2B bwd
            for s in range(T):
                tf = s                                # forward time index
                tb = T - 1 - s                        # backward time index
                gi_s = jnp.concatenate(
                    [gi_f[tf * B:(tf + 1) * B, :],
                     gi_b[tb * B:(tb + 1) * B, :]], axis=0)            # (2B, 3H), off-chain

                if s == 0:
                    # h_{-1} = 0  =>  recurrent matmul is identically zero; skip it.
                    rz = jax.nn.sigmoid(gi_s[:, 0:H2])
                    r, z = rz[:, 0:H], rz[:, H:H2]
                    n = jnp.tanh(gi_s[:, H2:H3] + r * b_hn)
                    h = (1.0 - z) * n
                else:
                    h_pad = jnp.concatenate([h, h], axis=-1) * pad_mask      # (2B, 2H)
                    gh = jnp.dot(h_pad, whh, preferred_element_type=f32)     # (2B, 3H), 1 matmul
                    rz = jax.nn.sigmoid(gi_s[:, 0:H2] + gh[:, 0:H2])         # one sigmoid for r|z
                    r, z = rz[:, 0:H], rz[:, H:H2]
                    n = jnp.tanh(gi_s[:, H2:H3] + r * (gh[:, H2:H3] + b_hn))
                    h = (1.0 - z) * n + z * h

                if collect is not None:
                    # time-major bidirectional output for the next layer (off the chain)
                    collect[tf * B:(tf + 1) * B, 0:H] = h[0:B]
                    collect[tb * B:(tb + 1) * B, H:H2] = h[B:B2]
                if is_top and s == 0:
                    # top layer's backward output at t = T-1 is exactly its first step (h0 = 0)
                    last_bwd = h[B:B2]

            if is_top:
                last_fwd = h[0:B]
            else:
                flat = collect[...]                   # (T*B, 2H) next-layer input, free read

        last = jnp.concatenate([last_fwd, last_bwd], axis=-1)               # (B, 2H)
        out_ref[...] = (jnp.dot(last, fcw_ref[...], preferred_element_type=f32)
                        + fcb_ref[...])

    return kernel


def bigru_forward(x, kparams, *, H, num_layers, out_dim):
    B, T, D_in = x.shape
    # Layout plumbing on the host: time-major flat input (row = t*B + b).
    x_tm = jnp.transpose(x, (1, 0, 2)).reshape(T * B, D_in)

    inputs = [x_tm]
    for l in range(num_layers):
        inputs += [kparams[f"wih{l}"], kparams[f"whh{l}"],
                   kparams[f"bih{l}"], kparams[f"bhn{l}"]]
    inputs += [kparams["fcw"], kparams["fcb"]]

    kernel = make_bigru_kernel(B, T, D_in, H, num_layers, out_dim)
    vmem = pl.BlockSpec(memory_space=pltpu.MemorySpace.VMEM)
    return pl.pallas_call(
        kernel,
        out_shape=jax.ShapeDtypeStruct((B, out_dim), jnp.float32),
        in_specs=[vmem] * len(inputs),
        out_specs=vmem,
        scratch_shapes=[pltpu.VMEM((T * B, 2 * H), jnp.float32)
                        for _ in range(num_layers - 1)],
    )(*inputs)


# ---------------- host-side parameter handling & pure-JAX reference ----------------

def init_torch_style_params(key, D_in, H, num_layers, out_dim):
    """PyTorch-layout parameters for nn.GRU(bidirectional=True) + nn.Linear(2H, out)."""
    params = {}

    def nrm(k, shape, scale=0.1):
        return scale * jax.random.normal(k, shape, jnp.float32)

    keys = iter(jax.random.split(key, num_layers * 2 * 4 + 2))
    for l in range(num_layers):
        in_dim = D_in if l == 0 else 2 * H
        for suffix in ("", "_reverse"):
            params[f"weight_ih_l{l}{suffix}"] = nrm(next(keys), (3 * H, in_dim))
            params[f"weight_hh_l{l}{suffix}"] = nrm(next(keys), (3 * H, H))
            params[f"bias_ih_l{l}{suffix}"] = nrm(next(keys), (3 * H,))
            params[f"bias_hh_l{l}{suffix}"] = nrm(next(keys), (3 * H,))
    params["fc_weight"] = nrm(next(keys), (out_dim, 2 * H))
    params["fc_bias"] = nrm(next(keys), (out_dim,))
    return params


def convert_params_for_kernel(pt, H, num_layers):
    """Repack PyTorch weights for the kernel:
       wih{l}: (in, 6H)  = [fwd r|z|n | bwd r|z|n]  (pre-transposed)
       whh{l}: (2H, 3H)  = block rows [fwd Whh^T ; bwd Whh^T]
       bih{l}: (1, 6H)   = [b_ir+b_hr, b_iz+b_hz, b_in] per direction
       bhn{l}: (2, H)    = [b_hn fwd ; b_hn bwd]
       fcw: (2H, out), fcb: (1, out)"""
    kp = {}
    for l in range(num_layers):
        Wf, Uf = pt[f"weight_ih_l{l}"], pt[f"weight_hh_l{l}"]
        bf, cf = pt[f"bias_ih_l{l}"], pt[f"bias_hh_l{l}"]
        Wb, Ub = pt[f"weight_ih_l{l}_reverse"], pt[f"weight_hh_l{l}_reverse"]
        bb, cb = pt[f"bias_ih_l{l}_reverse"], pt[f"bias_hh_l{l}_reverse"]

        kp[f"wih{l}"] = jnp.concatenate([Wf.T, Wb.T], axis=1)           # (in, 6H)
        kp[f"whh{l}"] = jnp.concatenate([Uf.T, Ub.T], axis=0)           # (2H, 3H)

        def input_bias(bi, bh):
            # r,z: b_i + b_h folded once into the hoisted projection; n: only b_in
            # (b_hn stays separate: n = tanh(gi_n + r*(gh_n + b_hn))).
            return jnp.concatenate([bi[0:H] + bh[0:H],
                                    bi[H:2 * H] + bh[H:2 * H],
                                    bi[2 * H:3 * H]])

        kp[f"bih{l}"] = jnp.concatenate([input_bias(bf, cf),
                                         input_bias(bb, cb)])[None, :]  # (1, 6H)
        kp[f"bhn{l}"] = jnp.stack([cf[2 * H:3 * H], cb[2 * H:3 * H]], axis=0)  # (2, H)

    kp["fcw"] = pt["fc_weight"].T                  # (2H, out_dim)
    kp["fcb"] = pt["fc_bias"][None, :]             # (1, out_dim)
    return kp


def reference_forward(x, pt, H, num_layers):
    """Pure-JAX mirror of the PyTorch forward (h0 = 0, gate order [r|z|n])."""
    def cell(xt, h, Wih, Whh, bih, bhh):
        gi = xt @ Wih.T + bih
        gh = h @ Whh.T + bhh
        r = jax.nn.sigmoid(gi[:, :H] + gh[:, :H])
        z = jax.nn.sigmoid(gi[:, H:2 * H] + gh[:, H:2 * H])
        n = jnp.tanh(gi[:, 2 * H:] + r * gh[:, 2 * H:])
        return (1.0 - z) * n + z * h

    B, T, _ = x.shape
    seq = x
    for l in range(num_layers):
        Wf, Uf = pt[f"weight_ih_l{l}"], pt[f"weight_hh_l{l}"]
        bf, cf = pt[f"bias_ih_l{l}"], pt[f"bias_hh_l{l}"]
        Wb, Ub = pt[f"weight_ih_l{l}_reverse"], pt[f"weight_hh_l{l}_reverse"]
        bb, cb = pt[f"bias_ih_l{l}_reverse"], pt[f"bias_hh_l{l}_reverse"]

        h = jnp.zeros((B, H), jnp.float32)
        fwd = []
        for t in range(T):
            h = cell(seq[:, t, :], h, Wf, Uf, bf, cf)
            fwd.append(h)
        h = jnp.zeros((B, H), jnp.float32)
        bwd = [None] * T
        for t in range(T - 1, -1, -1):
            h = cell(seq[:, t, :], h, Wb, Ub, bb, cb)
            bwd[t] = h
        seq = jnp.concatenate([jnp.stack(fwd, axis=1), jnp.stack(bwd, axis=1)], axis=-1)

    last = seq[:, -1, :]
    return last @ pt["fc_weight"].T + pt["fc_bias"]


if __name__ == "__main__":
    # Small shapes consistent with the module: input_size=8, hidden_size=32, num_layers=2,
    # output_size=4, batch=2, seq_len=8.
    B, T, D_in = 2, 8, 8
    H, num_layers, out_dim = 32, 2, 4

    key = jax.random.PRNGKey(0)
    kx, kp = jax.random.split(key)
    x = jax.random.normal(kx, (B, T, D_in), jnp.float32)

    pt_params = init_torch_style_params(kp, D_in, H, num_layers, out_dim)
    kparams = convert_params_for_kernel(pt_params, H, num_layers)

    out = bigru_forward(x, kparams, H=H, num_layers=num_layers, out_dim=out_dim)
    out = jax.block_until_ready(out)

    ref = reference_forward(x, pt_params, H, num_layers)
    assert out.shape == (B, out_dim)
    # Default (non-"highest") MXU precision in-kernel -> slightly loosened tolerance.
    assert jnp.allclose(out, ref, atol=2e-2, rtol=2e-2), (out, ref)
    print("KERNEL_OK")
</pallas_src>

<mosaic_0001>
module attributes {stable_mosaic.version = 11 : i64} {
  func.func @kernel(%arg0: memref<16x8xf32, #tpu.memory_space<vmem>>, %arg1: memref<8x192xf32, #tpu.memory_space<vmem>>, %arg2: memref<64x96xf32, #tpu.memory_space<vmem>>, %arg3: memref<1x192xf32, #tpu.memory_space<vmem>>, %arg4: memref<2x32xf32, #tpu.memory_space<vmem>>, %arg5: memref<64x192xf32, #tpu.memory_space<vmem>>, %arg6: memref<64x96xf32, #tpu.memory_space<vmem>>, %arg7: memref<1x192xf32, #tpu.memory_space<vmem>>, %arg8: memref<2x32xf32, #tpu.memory_space<vmem>>, %arg9: memref<64x4xf32, #tpu.memory_space<vmem>>, %arg10: memref<1x4xf32, #tpu.memory_space<vmem>>, %arg11: memref<2x4xf32, #tpu.memory_space<vmem>>, %arg12: memref<16x64xf32, #tpu.memory_space<vmem>>) attributes {dimension_semantics = [], scalar_prefetch = 0 : i64, scratch_operands = 1 : i64, tpu.core_type = #tpu.core_type<tc>} {
    %cst = arith.constant 1.000000e+00 : f32
    %0 = vector.broadcast %cst : f32 to vector<2x32xf32>
    %cst_0 = arith.constant 0.000000e+00 : f32
    %1 = vector.broadcast %cst_0 : f32 to vector<2x32xf32>
    %2 = tpu.concatenate %0, %1 in 1 : vector<2x32xf32>, vector<2x32xf32> -> vector<2x64xf32>
    %3 = tpu.concatenate %1, %0 in 1 : vector<2x32xf32>, vector<2x32xf32> -> vector<2x64xf32>
    %4 = tpu.concatenate %2, %3 in 0 : vector<2x64xf32>, vector<2x64xf32> -> vector<4x64xf32>
    %c0 = arith.constant 0 : index
    %c0_1 = arith.constant 0 : index
    %5 = vector.load %arg0[%c0, %c0_1] : memref<16x8xf32, #tpu.memory_space<vmem>>, vector<16x8xf32>
    %c0_2 = arith.constant 0 : index
    %c0_3 = arith.constant 0 : index
    %6 = vector.load %arg1[%c0_2, %c0_3] : memref<8x192xf32, #tpu.memory_space<vmem>>, vector<8x192xf32>
    %cst_4 = arith.constant dense<0.000000e+00> : vector<16x192xf32>
    %7 = tpu.matmul %5, %6, %cst_4 {dimension_numbers = #tpu.dot_dimension_numbers<[1], [0], [0], [1], [0, 0, 1, 1], [], []>} : vector<16x8xf32>, vector<8x192xf32>, vector<16x192xf32> -> vector<16x192xf32>
    %c0_5 = arith.constant 0 : index
    %c0_6 = arith.constant 0 : index
    %8 = vector.load %arg3[%c0_5, %c0_6] : memref<1x192xf32, #tpu.memory_space<vmem>>, vector<1x192xf32>
    %9 = vector.broadcast %8 : vector<1x192xf32> to vector<16x192xf32>
    %10 = arith.addf %7, %9 : vector<16x192xf32>
    %11 = vector.extract_strided_slice %10 {offsets = [0, 0], sizes = [16, 96], strides = [1, 1]} : vector<16x192xf32> to vector<16x96xf32>
    %12 = vector.extract_strided_slice %10 {offsets = [0, 96], sizes = [16, 96], strides = [1, 1]} : vector<16x192xf32> to vector<16x96xf32>
    %c0_7 = arith.constant 0 : index
    %c0_8 = arith.constant 0 : index
    %13 = vector.load %arg2[%c0_7, %c0_8] : memref<64x96xf32, #tpu.memory_space<vmem>>, vector<64x96xf32>
    %c0_9 = arith.constant 0 : index
    %c0_10 = arith.constant 0 : index
    %14 = vector.load %arg4[%c0_9, %c0_10] : memref<2x32xf32, #tpu.memory_space<vmem>>, vector<1x32xf32>
    %15 = vector.shape_cast %14 : vector<1x32xf32> to vector<1x32xf32>
    %16 = vector.broadcast %15 : vector<1x32xf32> to vector<2x32xf32>
    %c1 = arith.constant 1 : index
    %c0_11 = arith.constant 0 : index
    %17 = vector.load %arg4[%c1, %c0_11] : memref<2x32xf32, #tpu.memory_space<vmem>>, vector<1x32xf32>
    %18 = vector.shape_cast %17 : vector<1x32xf32> to vector<1x32xf32>
    %19 = vector.broadcast %18 : vector<1x32xf32> to vector<2x32xf32>
    %20 = tpu.concatenate %16, %19 in 0 : vector<2x32xf32>, vector<2x32xf32> -> vector<4x32xf32>
    %21 = vector.extract_strided_slice %11 {offsets = [0, 0], sizes = [2, 96], strides = [1, 1]} : vector<16x96xf32> to vector<2x96xf32>
    %22 = vector.extract_strided_slice %12 {offsets = [14, 0], sizes = [2, 96], strides = [1, 1]} : vector<16x96xf32> to vector<2x96xf32>
    %23 = tpu.concatenate %21, %22 in 0 : vector<2x96xf32>, vector<2x96xf32> -> vector<4x96xf32>
    %24 = vector.extract_strided_slice %23 {offsets = [0, 0], sizes = [4, 64], strides = [1, 1]} : vector<4x96xf32> to vector<4x64xf32>
    %25 = arith.negf %24 : vector<4x64xf32>
    %26 = math.exp %25 : vector<4x64xf32>
    %cst_12 = arith.constant 1.000000e+00 : f32
    %27 = vector.broadcast %cst_12 : f32 to vector<4x64xf32>
    %28 = arith.addf %27, %26 : vector<4x64xf32>
    %29 = arith.divf %27, %28 : vector<4x64xf32>
    %30 = vector.extract_strided_slice %29 {offsets = [0, 0], sizes = [4, 32], strides = [1, 1]} : vector<4x64xf32> to vector<4x32xf32>
    %31 = vector.extract_strided_slice %29 {offsets = [0, 32], sizes = [4, 32], strides = [1, 1]} : vector<4x64xf32> to vector<4x32xf32>
    %32 = vector.extract_strided_slice %23 {offsets = [0, 64], sizes = [4, 32], strides = [1, 1]} : vector<4x96xf32> to vector<4x32xf32>
    %33 = arith.mulf %30, %20 : vector<4x32xf32>
    %34 = arith.addf %32, %33 : vector<4x32xf32>
    %35 = math.tanh %34 : vector<4x32xf32>
    %cst_13 = arith.constant 1.000000e+00 : f32
    %36 = vector.broadcast %cst_13 : f32 to vector<4x32xf32>
    %37 = arith.subf %36, %31 : vector<4x32xf32>
    %38 = arith.mulf %37, %35 : vector<4x32xf32>
    %39 = vector.extract_strided_slice %38 {offsets = [0, 0], sizes = [2, 32], strides = [1, 1]} : vector<4x32xf32> to vector<2x32xf32>
    %c0_14 = arith.constant 0 : index
    %c0_15 = arith.constant 0 : index
    %40 = vector.load %arg12[%c0_14, %c0_15] : memref<16x64xf32, #tpu.memory_space<vmem>>, vector<2x32xf32>
    tpu.vector_store %arg12[%c0_14, %c0_15], %39 {strides = array<i32>} : memref<16x64xf32, #tpu.memory_space<vmem>>, vector<2x32xf32>,
    %41 = vector.extract_strided_slice %38 {offsets = [2, 0], sizes = [2, 32], strides = [1, 1]} : vector<4x32xf32> to vector<2x32xf32>
    %c14 = arith.constant 14 : index
    %c32 = arith.constant 32 : index
    %42 = vector.load %arg12[%c14, %c32] : memref<16x64xf32, #tpu.memory_space<vmem>>, vector<2x32xf32>
    tpu.vector_store %arg12[%c14, %c32], %41 {strides = array<i32>} : memref<16x64xf32, #tpu.memory_space<vmem>>, vector<2x32xf32>,
    %43 = vector.extract_strided_slice %11 {offsets = [2, 0], sizes = [2, 96], strides = [1, 1]} : vector<16x96xf32> to vector<2x96xf32>
    %44 = vector.extract_strided_slice %12 {offsets = [12, 0], sizes = [2, 96], strides = [1, 1]} : vector<16x96xf32> to vector<2x96xf32>
    %45 = tpu.concatenate %43, %44 in 0 : vector<2x96xf32>, vector<2x96xf32> -> vector<4x96xf32>
    %46 = tpu.concatenate %38, %38 in 1 : vector<4x32xf32>, vector<4x32xf32> -> vector<4x64xf32>
    %47 = arith.mulf %46, %4 : vector<4x64xf32>
    %cst_16 = arith.constant dense<0.000000e+00> : vector<4x96xf32>
    %48 = tpu.matmul %47, %13, %cst_16 {dimension_numbers = #tpu.dot_dimension_numbers<[1], [0], [0], [1], [0, 0, 1, 1], [], []>} : vector<4x64xf32>, vector<64x96xf32>, vector<4x96xf32> -> vector<4x96xf32>
    %49 = vector.extract_strided_slice %45 {offsets = [0, 0], sizes = [4, 64], strides = [1, 1]} : vector<4x96xf32> to vector<4x64xf32>
    %50 = vector.extract_strided_slice %48 {offsets = [0, 0], sizes = [4, 64], strides = [1, 1]} : vector<4x96xf32> to vector<4x64xf32>
    %51 = arith.addf %49, %50 : vector<4x64xf32>
    %52 = arith.negf %51 : vector<4x64xf32>
    %53 = math.exp %52 : vector<4x64xf32>
    %cst_17 = arith.constant 1.000000e+00 : f32
    %54 = vector.broadcast %cst_17 : f32 to vector<4x64xf32>
    %55 = arith.addf %54, %53 : vector<4x64xf32>
    %56 = arith.divf %54, %55 : vector<4x64xf32>
    %57 = vector.extract_strided_slice %56 {offsets = [0, 0], sizes = [4, 32], strides = [1, 1]} : vector<4x64xf32> to vector<4x32xf32>
    %58 = vector.extract_strided_slice %56 {offsets = [0, 32], sizes = [4, 32], strides = [1, 1]} : vector<4x64xf32> to vector<4x32xf32>
    %59 = vector.extract_strided_slice %45 {offsets = [0, 64], sizes = [4, 32], strides = [1, 1]} : vector<4x96xf32> to vector<4x32xf32>
    %60 = vector.extract_strided_slice %48 {offsets = [0, 64], sizes = [4, 32], strides = [1, 1]} : vector<4x96xf32> to vector<4x32xf32>
    %61 = arith.addf %60, %20 : vector<4x32xf32>
    %62 = arith.mulf %57, %61 : vector<4x32xf32>
    %63 = arith.addf %59, %62 : vector<4x32xf32>
    %64 = math.tanh %63 : vector<4x32xf32>
    %cst_18 = arith.constant 1.000000e+00 : f32
    %65 = vector.broadcast %cst_18 : f32 to vector<4x32xf32>
    %66 = arith.subf %65, %58 : vector<4x32xf32>
    %67 = arith.mulf %66, %64 : vector<4x32xf32>
    %68 = arith.mulf %58, %38 : vector<4x32xf32>
    %69 = arith.addf %67, %68 : vector<4x32xf32>
    %70 = vector.extract_strided_slice %69 {offsets = [0, 0], sizes = [2, 32], strides = [1, 1]} : vector<4x32xf32> to vector<2x32xf32>
    %c2 = arith.constant 2 : index
    %c0_19 = arith.constant 0 : index
    %71 = vector.load %arg12[%c2, %c0_19] : memref<16x64xf32, #tpu.memory_space<vmem>>, vector<2x32xf32>
    tpu.vector_store %arg12[%c2, %c0_19], %70 {strides = array<i32>} : memref<16x64xf32, #tpu.memory_space<vmem>>, vector<2x32xf32>,
    %72 = vector.extract_strided_slice %69 {offsets = [2, 0], sizes = [2, 32], strides = [1, 1]} : vector<4x32xf32> to vector<2x32xf32>
    %c12 = arith.constant 12 : index
    %c32_20 = arith.constant 32 : index
    %73 = vector.load %arg12[%c12, %c32_20] : memref<16x64xf32, #tpu.memory_space<vmem>>, vector<2x32xf32>
    tpu.vector_store %arg12[%c12, %c32_20], %72 {strides = array<i32>} : memref<16x64xf32, #tpu.memory_space<vmem>>, vector<2x32xf32>,
    %74 = vector.extract_strided_slice %11 {offsets = [4, 0], sizes = [2, 96], strides = [1, 1]} : vector<16x96xf32> to vector<2x96xf32>
    %75 = vector.extract_strided_slice %12 {offsets = [10, 0], sizes = [2, 96], strides = [1, 1]} : vector<16x96xf32> to vector<2x96xf32>
    %76 = tpu.concatenate %74, %75 in 0 : vector<2x96xf32>, vector<2x96xf32> -> vector<4x96xf32>
    %77 = tpu.concatenate %69, %69 in 1 : vector<4x32xf32>, vector<4x32xf32> -> vector<4x64xf32>
    %78 = arith.mulf %77, %4 : vector<4x64xf32>
    %cst_21 = arith.constant dense<0.000000e+00> : vector<4x96xf32>
    %79 = tpu.matmul %78, %13, %cst_21 {dimension_numbers = #tpu.dot_dimension_numbers<[1], [0], [0], [1], [0, 0, 1, 1], [], []>} : vector<4x64xf32>, vector<64x96xf32>, vector<4x96xf32> -> vector<4x96xf32>
    %80 = vector.extract_strided_slice %76 {offsets = [0, 0], sizes = [4, 64], strides = [1, 1]} : vector<4x96xf32> to vector<4x64xf32>
    %81 = vector.extract_strided_slice %79 {offsets = [0, 0], sizes = [4, 64], strides = [1, 1]} : vector<4x96xf32> to vector<4x64xf32>
    %82 = arith.addf %80, %81 : vector<4x64xf32>
    %83 = arith.negf %82 : vector<4x64xf32>
    %84 = math.exp %83 : vector<4x64xf32>
    %cst_22 = arith.constant 1.000000e+00 : f32
    %85 = vector.broadcast %cst_22 : f32 to vector<4x64xf32>
    %86 = arith.addf %85, %84 : vector<4x64xf32>
    %87 = arith.divf %85, %86 : vector<4x64xf32>
    %88 = vector.extract_strided_slice %87 {offsets = [0, 0], sizes = [4, 32], strides = [1, 1]} : vector<4x64xf32> to vector<4x32xf32>
    %89 = vector.extract_strided_slice %87 {offsets = [0, 32], sizes = [4, 32], strides = [1, 1]} : vector<4x64xf32> to vector<4x32xf32>
    %90 = vector.extract_strided_slice %76 {offsets = [0, 64], sizes = [4, 32], strides = [1, 1]} : vector<4x96xf32> to vector<4x32xf32>
    %91 = vector.extract_strided_slice %79 {offsets = [0, 64], sizes = [4, 32], strides = [1, 1]} : vector<4x96xf32> to vector<4x32xf32>
    %92 = arith.addf %91, %20 : vector<4x32xf32>
    %93 = arith.mulf %88, %92 : vector<4x32xf32>
    %94 = arith.addf %90, %93 : vector<4x32xf32>
    %95 = math.tanh %94 : vector<4x32xf32>
    %cst_23 = arith.constant 1.000000e+00 : f32
    %96 = vector.broadcast %cst_23 : f32 to vector<4x32xf32>
    %97 = arith.subf %96, %89 : vector<4x32xf32>
    %98 = arith.mulf %97, %95 : vector<4x32xf32>
    %99 = arith.mulf %89, %69 : vector<4x32xf32>
    %100 = arith.addf %98, %99 : vector<4x32xf32>
    %101 = vector.extract_strided_slice %100 {offsets = [0, 0], sizes = [2, 32], strides = [1, 1]} : vector<4x32xf32> to vector<2x32xf32>
    %c4 = arith.constant 4 : index
    %c0_24 = arith.constant 0 : index
    %102 = vector.load %arg12[%c4, %c0_24] : memref<16x64xf32, #tpu.memory_space<vmem>>, vector<2x32xf32>
    tpu.vector_store %arg12[%c4, %c0_24], %101 {strides = array<i32>} : memref<16x64xf32, #tpu.memory_space<vmem>>, vector<2x32xf32>,
    %103 = vector.extract_strided_slice %100 {offsets = [2, 0], sizes = [2, 32], strides = [1, 1]} : vector<4x32xf32> to vector<2x32xf32>
    %c10 = arith.constant 10 : index
    %c32_25 = arith.constant 32 : index
    %104 = vector.load %arg12[%c10, %c32_25] : memref<16x64xf32, #tpu.memory_space<vmem>>, vector<2x32xf32>
    tpu.vector_store %arg12[%c10, %c32_25], %103 {strides = array<i32>} : memref<16x64xf32, #tpu.memory_space<vmem>>, vector<2x32xf32>,
    %105 = vector.extract_strided_slice %11 {offsets = [6, 0], sizes = [2, 96], strides = [1, 1]} : vector<16x96xf32> to vector<2x96xf32>
    %106 = vector.extract_strided_slice %12 {offsets = [8, 0], sizes = [2, 96], strides = [1, 1]} : vector<16x96xf32> to vector<2x96xf32>
    %107 = tpu.concatenate %105, %106 in 0 : vector<2x96xf32>, vector<2x96xf32> -> vector<4x96xf32>
    %108 = tpu.concatenate %100, %100 in 1 : vector<4x32xf32>, vector<4x32xf32> -> vector<4x64xf32>
    %109 = arith.mulf %108, %4 : vector<4x64xf32>
    %cst_26 = arith.constant dense<0.000000e+00> : vector<4x96xf32>
    %110 = tpu.matmul %109, %13, %cst_26 {dimension_numbers = #tpu.dot_dimension_numbers<[1], [0], [0], [1], [0, 0, 1, 1], [], []>} : vector<4x64xf32>, vector<64x96xf32>, vector<4x96xf32> -> vector<4x96xf32>
    %111 = vector.extract_strided_slice %107 {offsets = [0, 0], sizes = [4, 64], strides = [1, 1]} : vector<4x96xf32> to vector<4x64xf32>
    %112 = vector.extract_strided_slice %110 {offsets = [0, 0], sizes = [4, 64], strides = [1, 1]} : vector<4x96xf32> to vector<4x64xf32>
    %113 = arith.addf %111, %112 : vector<4x64xf32>
    %114 = arith.negf %113 : vector<4x64xf32>
    %115 = math.exp %114 : vector<4x64xf32>
    %cst_27 = arith.constant 1.000000e+00 : f32
    %116 = vector.broadcast %cst_27 : f32 to vector<4x64xf32>
    %117 = arith.addf %116, %115 : vector<4x64xf32>
    %118 = arith.divf %116, %117 : vector<4x64xf32>
    %119 = vector.extract_strided_slice %118 {offsets = [0, 0], sizes = [4, 32], strides = [1, 1]} : vector<4x64xf32> to vector<4x32xf32>
    %120 = vector.extract_strided_slice %118 {offsets = [0, 32], sizes = [4, 32], strides = [1, 1]} : vector<4x64xf32> to vector<4x32xf32>
    %121 = vector.extract_strided_slice %107 {offsets = [0, 64], sizes = [4, 32], strides = [1, 1]} : vector<4x96xf32> to vector<4x32xf32>
    %122 = vector.extract_strided_slice %110 {offsets = [0, 64], sizes = [4, 32], strides = [1, 1]} : vector<4x96xf32> to vector<4x32xf32>
    %123 = arith.addf %122, %20 : vector<4x32xf32>
    %124 = arith.mulf %119, %123 : vector<4x32xf32>
    %125 = arith.addf %121, %124 : vector<4x32xf32>
    %126 = math.tanh %125 : vector<4x32xf32>
    %cst_28 = arith.constant 1.000000e+00 : f32
    %127 = vector.broadcast %cst_28 : f32 to vector<4x32xf32>
    %128 = arith.subf %127, %120 : vector<4x32xf32>
    %129 = arith.mulf %128, %126 : vector<4x32xf32>
    %130 = arith.mulf %120, %100 : vector<4x32xf32>
    %131 = arith.addf %129, %130 : vector<4x32xf32>
    %132 = vector.extract_strided_slice %131 {offsets = [0, 0], sizes = [2, 32], strides = [1, 1]} : vector<4x32xf32> to vector<2x32xf32>
    %c6 = arith.constant 6 : index
    %c0_29 = arith.constant 0 : index
    %133 = vector.load %arg12[%c6, %c0_29] : memref<16x64xf32, #tpu.memory_space<vmem>>, vector<2x32xf32>
    tpu.vector_store %arg12[%c6, %c0_29], %132 {strides = array<i32>} : memref<16x64xf32, #tpu.memory_space<vmem>>, vector<2x32xf32>,
    %134 = vector.extract_strided_slice %131 {offsets = [2, 0], sizes = [2, 32], strides = [1, 1]} : vector<4x32xf32> to vector<2x32xf32>
    %c8 = arith.constant 8 : index
    %c32_30 = arith.constant 32 : index
    %135 = vector.load %arg12[%c8, %c32_30] : memref<16x64xf32, #tpu.memory_space<vmem>>, vector<2x32xf32>
    tpu.vector_store %arg12[%c8, %c32_30], %134 {strides = array<i32>} : memref<16x64xf32, #tpu.memory_space<vmem>>, vector<2x32xf32>,
    %136 = vector.extract_strided_slice %11 {offsets = [8, 0], sizes = [2, 96], strides = [1, 1]} : vector<16x96xf32> to vector<2x96xf32>
    %137 = vector.extract_strided_slice %12 {offsets = [6, 0], sizes = [2, 96], strides = [1, 1]} : vector<16x96xf32> to vector<2x96xf32>
    %138 = tpu.concatenate %136, %137 in 0 : vector<2x96xf32>, vector<2x96xf32> -> vector<4x96xf32>
    %139 = tpu.concatenate %131, %131 in 1 : vector<4x32xf32>, vector<4x32xf32> -> vector<4x64xf32>
    %140 = arith.mulf %139, %4 : vector<4x64xf32>
    %cst_31 = arith.constant dense<0.000000e+00> : vector<4x96xf32>
    %141 = tpu.matmul %140, %13, %cst_31 {dimension_numbers = #tpu.dot_dimension_numbers<[1], [0], [0], [1], [0, 0, 1, 1], [], []>} : vector<4x64xf32>, vector<64x96xf32>, vector<4x96xf32> -> vector<4x96xf32>
    %142 = vector.extract_strided_slice %138 {offsets = [0, 0], sizes = [4, 64], strides = [1, 1]} : vector<4x96xf32> to vector<4x64xf32>
    %143 = vector.extract_strided_slice %141 {offsets = [0, 0], sizes = [4, 64], strides = [1, 1]} : vector<4x96xf32> to vector<4x64xf32>
    %144 = arith.addf %142, %143 : vector<4x64xf32>
    %145 = arith.negf %144 : vector<4x64xf32>
    %146 = math.exp %145 : vector<4x64xf32>
    %cst_32 = arith.constant 1.000000e+00 : f32
    %147 = vector.broadcast %cst_32 : f32 to vector<4x64xf32>
    %148 = arith.addf %147, %146 : vector<4x64xf32>
    %149 = arith.divf %147, %148 : vector<4x64xf32>
    %150 = vector.extract_strided_slice %149 {offsets = [0, 0], sizes = [4, 32], strides = [1, 1]} : vector<4x64xf32> to vector<4x32xf32>
    %151 = vector.extract_strided_slice %149 {offsets = [0, 32], sizes = [4, 32], strides = [1, 1]} : vector<4x64xf32> to vector<4x32xf32>
    %152 = vector.extract_strided_slice %138 {offsets = [0, 64], sizes = [4, 32], strides = [1, 1]} : vector<4x96xf32> to vector<4x32xf32>
    %153 = vector.extract_strided_slice %141 {offsets = [0, 64], sizes = [4, 32], strides = [1, 1]} : vector<4x96xf32> to vector<4x32xf32>
    %154 = arith.addf %153, %20 : vector<4x32xf32>
    %155 = arith.mulf %150, %154 : vector<4x32xf32>
    %156 = arith.addf %152, %155 : vector<4x32xf32>
    %157 = math.tanh %156 : vector<4x32xf32>
    %cst_33 = arith.constant 1.000000e+00 : f32
    %158 = vector.broadcast %cst_33 : f32 to vector<4x32xf32>
    %159 = arith.subf %158, %151 : vector<4x32xf32>
    %160 = arith.mulf %159, %157 : vector<4x32xf32>
    %161 = arith.mulf %151, %131 : vector<4x32xf32>
    %162 = arith.addf %160, %161 : vector<4x32xf32>
    %163 = vector.extract_strided_slice %162 {offsets = [0, 0], sizes = [2, 32], strides = [1, 1]} : vector<4x32xf32> to vector<2x32xf32>
    %c8_34 = arith.constant 8 : index
    %c0_35 = arith.constant 0 : index
    %164 = vector.load %arg12[%c8_34, %c0_35] : memref<16x64xf32, #tpu.memory_space<vmem>>, vector<2x32xf32>
    tpu.vector_store %arg12[%c8_34, %c0_35], %163 {strides = array<i32>} : memref<16x64xf32, #tpu.memory_space<vmem>>, vector<2x32xf32>,
    %165 = vector.extract_strided_slice %162 {offsets = [2, 0], sizes = [2, 32], strides = [1, 1]} : vector<4x32xf32> to vector<2x32xf32>
    %c6_36 = arith.constant 6 : index
    %c32_37 = arith.constant 32 : index
    %166 = vector.load %arg12[%c6_36, %c32_37] : memref<16x64xf32, #tpu.memory_space<vmem>>, vector<2x32xf32>
    tpu.vector_store %arg12[%c6_36, %c32_37], %165 {strides = array<i32>} : memref<16x64xf32, #tpu.memory_space<vmem>>, vector<2x32xf32>,
    %167 = vector.extract_strided_slice %11 {offsets = [10, 0], sizes = [2, 96], strides = [1, 1]} : vector<16x96xf32> to vector<2x96xf32>
    %168 = vector.extract_strided_slice %12 {offsets = [4, 0], sizes = [2, 96], strides = [1, 1]} : vector<16x96xf32> to vector<2x96xf32>
    %169 = tpu.concatenate %167, %168 in 0 : vector<2x96xf32>, vector<2x96xf32> -> vector<4x96xf32>
    %170 = tpu.concatenate %162, %162 in 1 : vector<4x32xf32>, vector<4x32xf32> -> vector<4x64xf32>
    %171 = arith.mulf %170, %4 : vector<4x64xf32>
    %cst_38 = arith.constant dense<0.000000e+00> : vector<4x96xf32>
    %172 = tpu.matmul %171, %13, %cst_38 {dimension_numbers = #tpu.dot_dimension_numbers<[1], [0], [0], [1], [0, 0, 1, 1], [], []>} : vector<4x64xf32>, vector<64x96xf32>, vector<4x96xf32> -> vector<4x96xf32>
    %173 = vector.extract_strided_slice %169 {offsets = [0, 0], sizes = [4, 64], strides = [1, 1]} : vector<4x96xf32> to vector<4x64xf32>
    %174 = vector.extract_strided_slice %172 {offsets = [0, 0], sizes = [4, 64], strides = [1, 1]} : vector<4x96xf32> to vector<4x64xf32>
    %175 = arith.addf %173, %174 : vector<4x64xf32>
    %176 = arith.negf %175 : vector<4x64xf32>
    %177 = math.exp %176 : vector<4x64xf32>
    %cst_39 = arith.constant 1.000000e+00 : f32
    %178 = vector.broadcast %cst_39 : f32 to vector<4x64xf32>
    %179 = arith.addf %178, %177 : vector<4x64xf32>
    %180 = arith.divf %178, %179 : vector<4x64xf32>
    %181 = vector.extract_strided_slice %180 {offsets = [0, 0], sizes = [4, 32], strides = [1, 1]} : vector<4x64xf32> to vector<4x32xf32>
    %182 = vector.extract_strided_slice %180 {offsets = [0, 32], sizes = [4, 32], strides = [1, 1]} : vector<4x64xf32> to vector<4x32xf32>
    %183 = vector.extract_strided_slice %169 {offsets = [0, 64], sizes = [4, 32], strides = [1, 1]} : vector<4x96xf32> to vector<4x32xf32>
    %184 = vector.extract_strided_slice %172 {offsets = [0, 64], sizes = [4, 32], strides = [1, 1]} : vector<4x96xf32> to vector<4x32xf32>
    %185 = arith.addf %184, %20 : vector<4x32xf32>
    %186 = arith.mulf %181, %185 : vector<4x32xf32>
    %187 = arith.addf %183, %186 : vector<4x32xf32>
    %188 = math.tanh %187 : vector<4x32xf32>
    %cst_40 = arith.constant 1.000000e+00 : f32
    %189 = vector.broadcast %cst_40 : f32 to vector<4x32xf32>
    %190 = arith.subf %189, %182 : vector<4x32xf32>
    %191 = arith.mulf %190, %188 : vector<4x32xf32>
    %192 = arith.mulf %182, %162 : vector<4x32xf32>
    %193 = arith.addf %191, %192 : vector<4x32xf32>
    %194 = vector.extract_strided_slice %193 {offsets = [0, 0], sizes = [2, 32], strides = [1, 1]} : vector<4x32xf32> to vector<2x32xf32>
    %c10_41 = arith.constant 10 : index
    %c0_42 = arith.constant 0 : index
    %195 = vector.load %arg12[%c10_41, %c0_42] : memref<16x64xf32, #tpu.memory_space<vmem>>, vector<2x32xf32>
    tpu.vector_store %arg12[%c10_41, %c0_42], %194 {strides = array<i32>} : memref<16x64xf32, #tpu.memory_space<vmem>>, vector<2x32xf32>,
    %196 = vector.extract_strided_slice %193 {offsets = [2, 0], sizes = [2, 32], strides = [1, 1]} : vector<4x32xf32> to vector<2x32xf32>
    %c4_43 = arith.constant 4 : index
    %c32_44 = arith.constant 32 : index
    %197 = vector.load %arg12[%c4_43, %c32_44] : memref<16x64xf32, #tpu.memory_space<vmem>>, vector<2x32xf32>
    tpu.vector_store %arg12[%c4_43, %c32_44], %196 {strides = array<i32>} : memref<16x64xf32, #tpu.memory_space<vmem>>, vector<2x32xf32>,
    %198 = vector.extract_strided_slice %11 {offsets = [12, 0], sizes = [2, 96], strides = [1, 1]} : vector<16x96xf32> to vector<2x96xf32>
    %199 = vector.extract_strided_slice %12 {offsets = [2, 0], sizes = [2, 96], strides = [1, 1]} : vector<16x96xf32> to vector<2x96xf32>
    %200 = tpu.concatenate %198, %199 in 0 : vector<2x96xf32>, vector<2x96xf32> -> vector<4x96xf32>
    %201 = tpu.concatenate %193, %193 in 1 : vector<4x32xf32>, vector<4x32xf32> -> vector<4x64xf32>
    %202 = arith.mulf %201, %4 : vector<4x64xf32>
    %cst_45 = arith.constant dense<0.000000e+00> : vector<4x96xf32>
    %203 = tpu.matmul %202, %13, %cst_45 {dimension_numbers = #tpu.dot_dimension_numbers<[1], [0], [0], [1], [0, 0, 1, 1], [], []>} : vector<4x64xf32>, vector<64x96xf32>, vector<4x96xf32> -> vector<4x96xf32>
    %204 = vector.extract_strided_slice %200 {offsets = [0, 0], sizes = [4, 64], strides = [1, 1]} : vector<4x96xf32> to vector<4x64xf32>
    %205 = vector.extract_strided_slice %203 {offsets = [0, 0], sizes = [4, 64], strides = [1, 1]} : vector<4x96xf32> to vector<4x64xf32>
    %206 = arith.addf %204, %205 : vector<4x64xf32>
    %207 = arith.negf %206 : vector<4x64xf32>
    %208 = math.exp %207 : vector<4x64xf32>
    %cst_46 = arith.constant 1.000000e+00 : f32
    %209 = vector.broadcast %cst_46 : f32 to vector<4x64xf32>
    %210 = arith.addf %209, %208 : vector<4x64xf32>
    %211 = arith.divf %209, %210 : vector<4x64xf32>
    %212 = vector.extract_strided_slice %211 {offsets = [0, 0], sizes = [4, 32], strides = [1, 1]} : vector<4x64xf32> to vector<4x32xf32>
    %213 = vector.extract_strided_slice %211 {offsets = [0, 32], sizes = [4, 32], strides = [1, 1]} : vector<4x64xf32> to vector<4x32xf32>
    %214 = vector.extract_strided_slice %200 {offsets = [0, 64], sizes = [4, 32], strides = [1, 1]} : vector<4x96xf32> to vector<4x32xf32>
    %215 = vector.extract_strided_slice %203 {offsets = [0, 64], sizes = [4, 32], strides = [1, 1]} : vector<4x96xf32> to vector<4x32xf32>
    %216 = arith.addf %215, %20 : vector<4x32xf32>
    %217 = arith.mulf %212, %216 : vector<4x32xf32>
    %218 = arith.addf %214, %217 : vector<4x32xf32>
    %219 = math.tanh %218 : vector<4x32xf32>
    %cst_47 = arith.constant 1.000000e+00 : f32
    %220 = vector.broadcast %cst_47 : f32 to vector<4x32xf32>
    %221 = arith.subf %220, %213 : vector<4x32xf32>
    %222 = arith.mulf %221, %219 : vector<4x32xf32>
    %223 = arith.mulf %213, %193 : vector<4x32xf32>
    %224 = arith.addf %222, %223 : vector<4x32xf32>
    %225 = vector.extract_strided_slice %224 {offsets = [0, 0], sizes = [2, 32], strides = [1, 1]} : vector<4x32xf32> to vector<2x32xf32>
    %c12_48 = arith.constant 12 : index
    %c0_49 = arith.constant 0 : index
    %226 = vector.load %arg12[%c12_48, %c0_49] : memref<16x64xf32, #tpu.memory_space<vmem>>, vector<2x32xf32>
    tpu.vector_store %arg12[%c12_48, %c0_49], %225 {strides = array<i32>} : memref<16x64xf32, #tpu.memory_space<vmem>>, vector<2x32xf32>,
    %227 = vector.extract_strided_slice %224 {offsets = [2, 0], sizes = [2, 32], strides = [1, 1]} : vector<4x32xf32> to vector<2x32xf32>
    %c2_50 = arith.constant 2 : index
    %c32_51 = arith.constant 32 : index
    %228 = vector.load %arg12[%c2_50, %c32_51] : memref<16x64xf32, #tpu.memory_space<vmem>>, vector<2x32xf32>
    tpu.vector_store %arg12[%c2_50, %c32_51], %227 {strides = array<i32>} : memref<16x64xf32, #tpu.memory_space<vmem>>, vector<2x32xf32>,
    %229 = vector.extract_strided_slice %11 {offsets = [14, 0], sizes = [2, 96], strides = [1, 1]} : vector<16x96xf32> to vector<2x96xf32>
    %230 = vector.extract_strided_slice %12 {offsets = [0, 0], sizes = [2, 96], strides = [1, 1]} : vector<16x96xf32> to vector<2x96xf32>
    %231 = tpu.concatenate %229, %230 in 0 : vector<2x96xf32>, vector<2x96xf32> -> vector<4x96xf32>
    %232 = tpu.concatenate %224, %224 in 1 : vector<4x32xf32>, vector<4x32xf32> -> vector<4x64xf32>
    %233 = arith.mulf %232, %4 : vector<4x64xf32>
    %cst_52 = arith.constant dense<0.000000e+00> : vector<4x96xf32>
    %234 = tpu.matmul %233, %13, %cst_52 {dimension_numbers = #tpu.dot_dimension_numbers<[1], [0], [0], [1], [0, 0, 1, 1], [], []>} : vector<4x64xf32>, vector<64x96xf32>, vector<4x96xf32> -> vector<4x96xf32>
    %235 = vector.extract_strided_slice %231 {offsets = [0, 0], sizes = [4, 64], strides = [1, 1]} : vector<4x96xf32> to vector<4x64xf32>
    %236 = vector.extract_strided_slice %234 {offsets = [0, 0], sizes = [4, 64], strides = [1, 1]} : vector<4x96xf32> to vector<4x64xf32>
    %237 = arith.addf %235, %236 : vector<4x64xf32>
    %238 = arith.negf %237 : vector<4x64xf32>
    %239 = math.exp %238 : vector<4x64xf32>
    %cst_53 = arith.constant 1.000000e+00 : f32
    %240 = vector.broadcast %cst_53 : f32 to vector<4x64xf32>
    %241 = arith.addf %240, %239 : vector<4x64xf32>
    %242 = arith.divf %240, %241 : vector<4x64xf32>
    %243 = vector.extract_strided_slice %242 {offsets = [0, 0], sizes = [4, 32], strides = [1, 1]} : vector<4x64xf32> to vector<4x32xf32>
    %244 = vector.extract_strided_slice %242 {offsets = [0, 32], sizes = [4, 32], strides = [1, 1]} : vector<4x64xf32> to vector<4x32xf32>
    %245 = vector.extract_strided_slice %231 {offsets = [0, 64], sizes = [4, 32], strides = [1, 1]} : vector<4x96xf32> to vector<4x32xf32>
    %246 = vector.extract_strided_slice %234 {offsets = [0, 64], sizes = [4, 32], strides = [1, 1]} : vector<4x96xf32> to vector<4x32xf32>
    %247 = arith.addf %246, %20 : vector<4x32xf32>
    %248 = arith.mulf %243, %247 : vector<4x32xf32>
    %249 = arith.addf %245, %248 : vector<4x32xf32>
    %250 = math.tanh %249 : vector<4x32xf32>
    %cst_54 = arith.constant 1.000000e+00 : f32
    %251 = vector.broadcast %cst_54 : f32 to vector<4x32xf32>
    %252 = arith.subf %251, %244 : vector<4x32xf32>
    %253 = arith.mulf %252, %250 : vector<4x32xf32>
    %254 = arith.mulf %244, %224 : vector<4x32xf32>
    %255 = arith.addf %253, %254 : vector<4x32xf32>
    %256 = vector.extract_strided_slice %255 {offsets = [0, 0], sizes = [2, 32], strides = [1, 1]} : vector<4x32xf32> to vector<2x32xf32>
    %c14_55 = arith.constant 14 : index
    %c0_56 = arith.constant 0 : index
    %257 = vector.load %arg12[%c14_55, %c0_56] : memref<16x64xf32, #tpu.memory_space<vmem>>, vector<2x32xf32>
    tpu.vector_store %arg12[%c14_55, %c0_56], %256 {strides = array<i32>} : memref<16x64xf32, #tpu.memory_space<vmem>>, vector<2x32xf32>,
    %258 = vector.extract_strided_slice %255 {offsets = [2, 0], sizes = [2, 32], strides = [1, 1]} : vector<4x32xf32> to vector<2x32xf32>
    %c0_57 = arith.constant 0 : index
    %c32_58 = arith.constant 32 : index
    %259 = vector.load %arg12[%c0_57, %c32_58] : memref<16x64xf32, #tpu.memory_space<vmem>>, vector<2x32xf32>
    tpu.vector_store %arg12[%c0_57, %c32_58], %258 {strides = array<i32>} : memref<16x64xf32, #tpu.memory_space<vmem>>, vector<2x32xf32>,
    %c0_59 = arith.constant 0 : index
    %c0_60 = arith.constant 0 : index
    %260 = vector.load %arg12[%c0_59, %c0_60] : memref<16x64xf32, #tpu.memory_space<vmem>>, vector<16x64xf32>
    %c0_61 = arith.constant 0 : index
    %c0_62 = arith.constant 0 : index
    %261 = vector.load %arg5[%c0_61, %c0_62] : memref<64x192xf32, #tpu.memory_space<vmem>>, vector<64x192xf32>
    %cst_63 = arith.constant dense<0.000000e+00> : vector<16x192xf32>
    %262 = tpu.matmul %260, %261, %cst_63 {dimension_numbers = #tpu.dot_dimension_numbers<[1], [0], [0], [1], [0, 0, 1, 1], [], []>} : vector<16x64xf32>, vector<64x192xf32>, vector<16x192xf32> -> vector<16x192xf32>
    %c0_64 = arith.constant 0 : index
    %c0_65 = arith.constant 0 : index
    %263 = vector.load %arg7[%c0_64, %c0_65] : memref<1x192xf32, #tpu.memory_space<vmem>>, vector<1x192xf32>
    %264 = vector.broadcast %263 : vector<1x192xf32> to vector<16x192xf32>
    %265 = arith.addf %262, %264 : vector<16x192xf32>
    %266 = vector.extract_strided_slice %265 {offsets = [0, 0], sizes = [16, 96], strides = [1, 1]} : vector<16x192xf32> to vector<16x96xf32>
    %267 = vector.extract_strided_slice %265 {offsets = [0, 96], sizes = [16, 96], strides = [1, 1]} : vector<16x192xf32> to vector<16x96xf32>
    %c0_66 = arith.constant 0 : index
    %c0_67 = arith.constant 0 : index
    %268 = vector.load %arg6[%c0_66, %c0_67] : memref<64x96xf32, #tpu.memory_space<vmem>>, vector<64x96xf32>
    %c0_68 = arith.constant 0 : index
    %c0_69 = arith.constant 0 : index
    %269 = vector.load %arg8[%c0_68, %c0_69] : memref<2x32xf32, #tpu.memory_space<vmem>>, vector<1x32xf32>
    %270 = vector.shape_cast %269 : vector<1x32xf32> to vector<1x32xf32>
    %271 = vector.broadcast %270 : vector<1x32xf32> to vector<2x32xf32>
    %c1_70 = arith.constant 1 : index
    %c0_71 = arith.constant 0 : index
    %272 = vector.load %arg8[%c1_70, %c0_71] : memref<2x32xf32, #tpu.memory_space<vmem>>, vector<1x32xf32>
    %273 = vector.shape_cast %272 : vector<1x32xf32> to vector<1x32xf32>
    %274 = vector.broadcast %273 : vector<1x32xf32> to vector<2x32xf32>
    %275 = tpu.concatenate %271, %274 in 0 : vector<2x32xf32>, vector<2x32xf32> -> vector<4x32xf32>
    %276 = vector.extract_strided_slice %266 {offsets = [0, 0], sizes = [2, 96], strides = [1, 1]} : vector<16x96xf32> to vector<2x96xf32>
    %277 = vector.extract_strided_slice %267 {offsets = [14, 0], sizes = [2, 96], strides = [1, 1]} : vector<16x96xf32> to vector<2x96xf32>
    %278 = tpu.concatenate %276, %277 in 0 : vector<2x96xf32>, vector<2x96xf32> -> vector<4x96xf32>
    %279 = vector.extract_strided_slice %278 {offsets = [0, 0], sizes = [4, 64], strides = [1, 1]} : vector<4x96xf32> to vector<4x64xf32>
    %280 = arith.negf %279 : vector<4x64xf32>
    %281 = math.exp %280 : vector<4x64xf32>
    %cst_72 = arith.constant 1.000000e+00 : f32
    %282 = vector.broadcast %cst_72 : f32 to vector<4x64xf32>
    %283 = arith.addf %282, %281 : vector<4x64xf32>
    %284 = arith.divf %282, %283 : vector<4x64xf32>
    %285 = vector.extract_strided_slice %284 {offsets = [0, 0], sizes = [4, 32], strides = [1, 1]} : vector<4x64xf32> to vector<4x32xf32>
    %286 = vector.extract_strided_slice %284 {offsets = [0, 32], sizes = [4, 32], strides = [1, 1]} : vector<4x64xf32> to vector<4x32xf32>
    %287 = vector.extract_strided_slice %278 {offsets = [0, 64], sizes = [4, 32], strides = [1, 1]} : vector<4x96xf32> to vector<4x32xf32>
    %288 = arith.mulf %285, %275 : vector<4x32xf32>
    %289 = arith.addf %287, %288 : vector<4x32xf32>
    %290 = math.tanh %289 : vector<4x32xf32>
    %cst_73 = arith.constant 1.000000e+00 : f32
    %291 = vector.broadcast %cst_73 : f32 to vector<4x32xf32>
    %292 = arith.subf %291, %286 : vector<4x32xf32>
    %293 = arith.mulf %292, %290 : vector<4x32xf32>
    %294 = vector.extract_strided_slice %293 {offsets = [2, 0], sizes = [2, 32], strides = [1, 1]} : vector<4x32xf32> to vector<2x32xf32>
    %295 = vector.extract_strided_slice %266 {offsets = [2, 0], sizes = [2, 96], strides = [1, 1]} : vector<16x96xf32> to vector<2x96xf32>
    %296 = vector.extract_strided_slice %267 {offsets = [12, 0], sizes = [2, 96], strides = [1, 1]} : vector<16x96xf32> to vector<2x96xf32>
    %297 = tpu.concatenate %295, %296 in 0 : vector<2x96xf32>, vector<2x96xf32> -> vector<4x96xf32>
    %298 = tpu.concatenate %293, %293 in 1 : vector<4x32xf32>, vector<4x32xf32> -> vector<4x64xf32>
    %299 = arith.mulf %298, %4 : vector<4x64xf32>
    %cst_74 = arith.constant dense<0.000000e+00> : vector<4x96xf32>
    %300 = tpu.matmul %299, %268, %cst_74 {dimension_numbers = #tpu.dot_dimension_numbers<[1], [0], [0], [1], [0, 0, 1, 1], [], []>} : vector<4x64xf32>, vector<64x96xf32>, vector<4x96xf32> -> vector<4x96xf32>
    %301 = vector.extract_strided_slice %297 {offsets = [0, 0], sizes = [4, 64], strides = [1, 1]} : vector<4x96xf32> to vector<4x64xf32>
    %302 = vector.extract_strided_slice %300 {offsets = [0, 0], sizes = [4, 64], strides = [1, 1]} : vector<4x96xf32> to vector<4x64xf32>
    %303 = arith.addf %301, %302 : vector<4x64xf32>
    %304 = arith.negf %303 : vector<4x64xf32>
    %305 = math.exp %304 : vector<4x64xf32>
    %cst_75 = arith.constant 1.000000e+00 : f32
    %306 = vector.broadcast %cst_75 : f32 to vector<4x64xf32>
    %307 = arith.addf %306, %305 : vector<4x64xf32>
    %308 = arith.divf %306, %307 : vector<4x64xf32>
    %309 = vector.extract_strided_slice %308 {offsets = [0, 0], sizes = [4, 32], strides = [1, 1]} : vector<4x64xf32> to vector<4x32xf32>
    %310 = vector.extract_strided_slice %308 {offsets = [0, 32], sizes = [4, 32], strides = [1, 1]} : vector<4x64xf32> to vector<4x32xf32>
    %311 = vector.extract_strided_slice %297 {offsets = [0, 64], sizes = [4, 32], strides = [1, 1]} : vector<4x96xf32> to vector<4x32xf32>
    %312 = vector.extract_strided_slice %300 {offsets = [0, 64], sizes = [4, 32], strides = [1, 1]} : vector<4x96xf32> to vector<4x32xf32>
    %313 = arith.addf %312, %275 : vector<4x32xf32>
    %314 = arith.mulf %309, %313 : vector<4x32xf32>
    %315 = arith.addf %311, %314 : vector<4x32xf32>
    %316 = math.tanh %315 : vector<4x32xf32>
    %cst_76 = arith.constant 1.000000e+00 : f32
    %317 = vector.broadcast %cst_76 : f32 to vector<4x32xf32>
    %318 = arith.subf %317, %310 : vector<4x32xf32>
    %319 = arith.mulf %318, %316 : vector<4x32xf32>
    %320 = arith.mulf %310, %293 : vector<4x32xf32>
    %321 = arith.addf %319, %320 : vector<4x32xf32>
    %322 = vector.extract_strided_slice %266 {offsets = [4, 0], sizes = [2, 96], strides = [1, 1]} : vector<16x96xf32> to vector<2x96xf32>
    %323 = vector.extract_strided_slice %267 {offsets = [10, 0], sizes = [2, 96], strides = [1, 1]} : vector<16x96xf32> to vector<2x96xf32>
    %324 = tpu.concatenate %322, %323 in 0 : vector<2x96xf32>, vector<2x96xf32> -> vector<4x96xf32>
    %325 = tpu.concatenate %321, %321 in 1 : vector<4x32xf32>, vector<4x32xf32> -> vector<4x64xf32>
    %326 = arith.mulf %325, %4 : vector<4x64xf32>
    %cst_77 = arith.constant dense<0.000000e+00> : vector<4x96xf32>
    %327 = tpu.matmul %326, %268, %cst_77 {dimension_numbers = #tpu.dot_dimension_numbers<[1], [0], [0], [1], [0, 0, 1, 1], [], []>} : vector<4x64xf32>, vector<64x96xf32>, vector<4x96xf32> -> vector<4x96xf32>
    %328 = vector.extract_strided_slice %324 {offsets = [0, 0], sizes = [4, 64], strides = [1, 1]} : vector<4x96xf32> to vector<4x64xf32>
    %329 = vector.extract_strided_slice %327 {offsets = [0, 0], sizes = [4, 64], strides = [1, 1]} : vector<4x96xf32> to vector<4x64xf32>
    %330 = arith.addf %328, %329 : vector<4x64xf32>
    %331 = arith.negf %330 : vector<4x64xf32>
    %332 = math.exp %331 : vector<4x64xf32>
    %cst_78 = arith.constant 1.000000e+00 : f32
    %333 = vector.broadcast %cst_78 : f32 to vector<4x64xf32>
    %334 = arith.addf %333, %332 : vector<4x64xf32>
    %335 = arith.divf %333, %334 : vector<4x64xf32>
    %336 = vector.extract_strided_slice %335 {offsets = [0, 0], sizes = [4, 32], strides = [1, 1]} : vector<4x64xf32> to vector<4x32xf32>
    %337 = vector.extract_strided_slice %335 {offsets = [0, 32], sizes = [4, 32], strides = [1, 1]} : vector<4x64xf32> to vector<4x32xf32>
    %338 = vector.extract_strided_slice %324 {offsets = [0, 64], sizes = [4, 32], strides = [1, 1]} : vector<4x96xf32> to vector<4x32xf32>
    %339 = vector.extract_strided_slice %327 {offsets = [0, 64], sizes = [4, 32], strides = [1, 1]} : vector<4x96xf32> to vector<4x32xf32>
    %340 = arith.addf %339, %275 : vector<4x32xf32>
    %341 = arith.mulf %336, %340 : vector<4x32xf32>
    %342 = arith.addf %338, %341 : vector<4x32xf32>
    %343 = math.tanh %342 : vector<4x32xf32>
    %cst_79 = arith.constant 1.000000e+00 : f32
    %344 = vector.broadcast %cst_79 : f32 to vector<4x32xf32>
    %345 = arith.subf %344, %337 : vector<4x32xf32>
    %346 = arith.mulf %345, %343 : vector<4x32xf32>
    %347 = arith.mulf %337, %321 : vector<4x32xf32>
    %348 = arith.addf %346, %347 : vector<4x32xf32>
    %349 = vector.extract_strided_slice %266 {offsets = [6, 0], sizes = [2, 96], strides = [1, 1]} : vector<16x96xf32> to vector<2x96xf32>
    %350 = vector.extract_strided_slice %267 {offsets = [8, 0], sizes = [2, 96], strides = [1, 1]} : vector<16x96xf32> to vector<2x96xf32>
    %351 = tpu.concatenate %349, %350 in 0 : vector<2x96xf32>, vector<2x96xf32> -> vector<4x96xf32>
    %352 = tpu.concatenate %348, %348 in 1 : vector<4x32xf32>, vector<4x32xf32> -> vector<4x64xf32>
    %353 = arith.mulf %352, %4 : vector<4x64xf32>
    %cst_80 = arith.constant dense<0.000000e+00> : vector<4x96xf32>
    %354 = tpu.matmul %353, %268, %cst_80 {dimension_numbers = #tpu.dot_dimension_numbers<[1], [0], [0], [1], [0, 0, 1, 1], [], []>} : vector<4x64xf32>, vector<64x96xf32>, vector<4x96xf32> -> vector<4x96xf32>
    %355 = vector.extract_strided_slice %351 {offsets = [0, 0], sizes = [4, 64], strides = [1, 1]} : vector<4x96xf32> to vector<4x64xf32>
    %356 = vector.extract_strided_slice %354 {offsets = [0, 0], sizes = [4, 64], strides = [1, 1]} : vector<4x96xf32> to vector<4x64xf32>
    %357 = arith.addf %355, %356 : vector<4x64xf32>
    %358 = arith.negf %357 : vector<4x64xf32>
    %359 = math.exp %358 : vector<4x64xf32>
    %cst_81 = arith.constant 1.000000e+00 : f32
    %360 = vector.broadcast %cst_81 : f32 to vector<4x64xf32>
    %361 = arith.addf %360, %359 : vector<4x64xf32>
    %362 = arith.divf %360, %361 : vector<4x64xf32>
    %363 = vector.extract_strided_slice %362 {offsets = [0, 0], sizes = [4, 32], strides = [1, 1]} : vector<4x64xf32> to vector<4x32xf32>
    %364 = vector.extract_strided_slice %362 {offsets = [0, 32], sizes = [4, 32], strides = [1, 1]} : vector<4x64xf32> to vector<4x32xf32>
    %365 = vector.extract_strided_slice %351 {offsets = [0, 64], sizes = [4, 32], strides = [1, 1]} : vector<4x96xf32> to vector<4x32xf32>
    %366 = vector.extract_strided_slice %354 {offsets = [0, 64], sizes = [4, 32], strides = [1, 1]} : vector<4x96xf32> to vector<4x32xf32>
    %367 = arith.addf %366, %275 : vector<4x32xf32>
    %368 = arith.mulf %363, %367 : vector<4x32xf32>
    %369 = arith.addf %365, %368 : vector<4x32xf32>
    %370 = math.tanh %369 : vector<4x32xf32>
    %cst_82 = arith.constant 1.000000e+00 : f32
    %371 = vector.broadcast %cst_82 : f32 to vector<4x32xf32>
    %372 = arith.subf %371, %364 : vector<4x32xf32>
    %373 = arith.mulf %372, %370 : vector<4x32xf32>
    %374 = arith.mulf %364, %348 : vector<4x32xf32>
    %375 = arith.addf %373, %374 : vector<4x32xf32>
    %376 = vector.extract_strided_slice %266 {offsets = [8, 0], sizes = [2, 96], strides = [1, 1]} : vector<16x96xf32> to vector<2x96xf32>
    %377 = vector.extract_strided_slice %267 {offsets = [6, 0], sizes = [2, 96], strides = [1, 1]} : vector<16x96xf32> to vector<2x96xf32>
    %378 = tpu.concatenate %376, %377 in 0 : vector<2x96xf32>, vector<2x96xf32> -> vector<4x96xf32>
    %379 = tpu.concatenate %375, %375 in 1 : vector<4x32xf32>, vector<4x32xf32> -> vector<4x64xf32>
    %380 = arith.mulf %379, %4 : vector<4x64xf32>
    %cst_83 = arith.constant dense<0.000000e+00> : vector<4x96xf32>
    %381 = tpu.matmul %380, %268, %cst_83 {dimension_numbers = #tpu.dot_dimension_numbers<[1], [0], [0], [1], [0, 0, 1, 1], [], []>} : vector<4x64xf32>, vector<64x96xf32>, vector<4x96xf32> -> vector<4x96xf32>
    %382 = vector.extract_strided_slice %378 {offsets = [0, 0], sizes = [4, 64], strides = [1, 1]} : vector<4x96xf32> to vector<4x64xf32>
    %383 = vector.extract_strided_slice %381 {offsets = [0, 0], sizes = [4, 64], strides = [1, 1]} : vector<4x96xf32> to vector<4x64xf32>
    %384 = arith.addf %382, %383 : vector<4x64xf32>
    %385 = arith.negf %384 : vector<4x64xf32>
    %386 = math.exp %385 : vector<4x64xf32>
    %cst_84 = arith.constant 1.000000e+00 : f32
    %387 = vector.broadcast %cst_84 : f32 to vector<4x64xf32>
    %388 = arith.addf %387, %386 : vector<4x64xf32>
    %389 = arith.divf %387, %388 : vector<4x64xf32>
    %390 = vector.extract_strided_slice %389 {offsets = [0, 0], sizes = [4, 32], strides = [1, 1]} : vector<4x64xf32> to vector<4x32xf32>
    %391 = vector.extract_strided_slice %389 {offsets = [0, 32], sizes = [4, 32], strides = [1, 1]} : vector<4x64xf32> to vector<4x32xf32>
    %392 = vector.extract_strided_slice %378 {offsets = [0, 64], sizes = [4, 32], strides = [1, 1]} : vector<4x96xf32> to vector<4x32xf32>
    %393 = vector.extract_strided_slice %381 {offsets = [0, 64], sizes = [4, 32], strides = [1, 1]} : vector<4x96xf32> to vector<4x32xf32>
    %394 = arith.addf %393, %275 : vector<4x32xf32>
    %395 = arith.mulf %390, %394 : vector<4x32xf32>
    %396 = arith.addf %392, %395 : vector<4x32xf32>
    %397 = math.tanh %396 : vector<4x32xf32>
    %cst_85 = arith.constant 1.000000e+00 : f32
    %398 = vector.broadcast %cst_85 : f32 to vector<4x32xf32>
    %399 = arith.subf %398, %391 : vector<4x32xf32>
    %400 = arith.mulf %399, %397 : vector<4x32xf32>
    %401 = arith.mulf %391, %375 : vector<4x32xf32>
    %402 = arith.addf %400, %401 : vector<4x32xf32>
    %403 = vector.extract_strided_slice %266 {offsets = [10, 0], sizes = [2, 96], strides = [1, 1]} : vector<16x96xf32> to vector<2x96xf32>
    %404 = vector.extract_strided_slice %267 {offsets = [4, 0], sizes = [2, 96], strides = [1, 1]} : vector<16x96xf32> to vector<2x96xf32>
    %405 = tpu.concatenate %403, %404 in 0 : vector<2x96xf32>, vector<2x96xf32> -> vector<4x96xf32>
    %406 = tpu.concatenate %402, %402 in 1 : vector<4x32xf32>, vector<4x32xf32> -> vector<4x64xf32>
    %407 = arith.mulf %406, %4 : vector<4x64xf32>
    %cst_86 = arith.constant dense<0.000000e+00> : vector<4x96xf32>
    %408 = tpu.matmul %407, %268, %cst_86 {dimension_numbers = #tpu.dot_dimension_numbers<[1], [0], [0], [1], [0, 0, 1, 1], [], []>} : vector<4x64xf32>, vector<64x96xf32>, vector<4x96xf32> -> vector<4x96xf32>
    %409 = vector.extract_strided_slice %405 {offsets = [0, 0], sizes = [4, 64], strides = [1, 1]} : vector<4x96xf32> to vector<4x64xf32>
    %410 = vector.extract_strided_slice %408 {offsets = [0, 0], sizes = [4, 64], strides = [1, 1]} : vector<4x96xf32> to vector<4x64xf32>
    %411 = arith.addf %409, %410 : vector<4x64xf32>
    %412 = arith.negf %411 : vector<4x64xf32>
    %413 = math.exp %412 : vector<4x64xf32>
    %cst_87 = arith.constant 1.000000e+00 : f32
    %414 = vector.broadcast %cst_87 : f32 to vector<4x64xf32>
    %415 = arith.addf %414, %413 : vector<4x64xf32>
    %416 = arith.divf %414, %415 : vector<4x64xf32>
    %417 = vector.extract_strided_slice %416 {offsets = [0, 0], sizes = [4, 32], strides = [1, 1]} : vector<4x64xf32> to vector<4x32xf32>
    %418 = vector.extract_strided_slice %416 {offsets = [0, 32], sizes = [4, 32], strides = [1, 1]} : vector<4x64xf32> to vector<4x32xf32>
    %419 = vector.extract_strided_slice %405 {offsets = [0, 64], sizes = [4, 32], strides = [1, 1]} : vector<4x96xf32> to vector<4x32xf32>
    %420 = vector.extract_strided_slice %408 {offsets = [0, 64], sizes = [4, 32], strides = [1, 1]} : vector<4x96xf32> to vector<4x32xf32>
    %421 = arith.addf %420, %275 : vector<4x32xf32>
    %422 = arith.mulf %417, %421 : vector<4x32xf32>
    %423 = arith.addf %419, %422 : vector<4x32xf32>
    %424 = math.tanh %423 : vector<4x32xf32>
    %cst_88 = arith.constant 1.000000e+00 : f32
    %425 = vector.broadcast %cst_88 : f32 to vector<4x32xf32>
    %426 = arith.subf %425, %418 : vector<4x32xf32>
    %427 = arith.mulf %426, %424 : vector<4x32xf32>
    %428 = arith.mulf %418, %402 : vector<4x32xf32>
    %429 = arith.addf %427, %428 : vector<4x32xf32>
    %430 = vector.extract_strided_slice %266 {offsets = [12, 0], sizes = [2, 96], strides = [1, 1]} : vector<16x96xf32> to vector<2x96xf32>
    %431 = vector.extract_strided_slice %267 {offsets = [2, 0], sizes = [2, 96], strides = [1, 1]} : vector<16x96xf32> to vector<2x96xf32>
    %432 = tpu.concatenate %430, %431 in 0 : vector<2x96xf32>, vector<2x96xf32> -> vector<4x96xf32>
    %433 = tpu.concatenate %429, %429 in 1 : vector<4x32xf32>, vector<4x32xf32> -> vector<4x64xf32>
    %434 = arith.mulf %433, %4 : vector<4x64xf32>
    %cst_89 = arith.constant dense<0.000000e+00> : vector<4x96xf32>
    %435 = tpu.matmul %434, %268, %cst_89 {dimension_numbers = #tpu.dot_dimension_numbers<[1], [0], [0], [1], [0, 0, 1, 1], [], []>} : vector<4x64xf32>, vector<64x96xf32>, vector<4x96xf32> -> vector<4x96xf32>
    %436 = vector.extract_strided_slice %432 {offsets = [0, 0], sizes = [4, 64], strides = [1, 1]} : vector<4x96xf32> to vector<4x64xf32>
    %437 = vector.extract_strided_slice %435 {offsets = [0, 0], sizes = [4, 64], strides = [1, 1]} : vector<4x96xf32> to vector<4x64xf32>
    %438 = arith.addf %436, %437 : vector<4x64xf32>
    %439 = arith.negf %438 : vector<4x64xf32>
    %440 = math.exp %439 : vector<4x64xf32>
    %cst_90 = arith.constant 1.000000e+00 : f32
    %441 = vector.broadcast %cst_90 : f32 to vector<4x64xf32>
    %442 = arith.addf %441, %440 : vector<4x64xf32>
    %443 = arith.divf %441, %442 : vector<4x64xf32>
    %444 = vector.extract_strided_slice %443 {offsets = [0, 0], sizes = [4, 32], strides = [1, 1]} : vector<4x64xf32> to vector<4x32xf32>
    %445 = vector.extract_strided_slice %443 {offsets = [0, 32], sizes = [4, 32], strides = [1, 1]} : vector<4x64xf32> to vector<4x32xf32>
    %446 = vector.extract_strided_slice %432 {offsets = [0, 64], sizes = [4, 32], strides = [1, 1]} : vector<4x96xf32> to vector<4x32xf32>
    %447 = vector.extract_strided_slice %435 {offsets = [0, 64], sizes = [4, 32], strides = [1, 1]} : vector<4x96xf32> to vector<4x32xf32>
    %448 = arith.addf %447, %275 : vector<4x32xf32>
    %449 = arith.mulf %444, %448 : vector<4x32xf32>
    %450 = arith.addf %446, %449 : vector<4x32xf32>
    %451 = math.tanh %450 : vector<4x32xf32>
    %cst_91 = arith.constant 1.000000e+00 : f32
    %452 = vector.broadcast %cst_91 : f32 to vector<4x32xf32>
    %453 = arith.subf %452, %445 : vector<4x32xf32>
    %454 = arith.mulf %453, %451 : vector<4x32xf32>
    %455 = arith.mulf %445, %429 : vector<4x32xf32>
    %456 = arith.addf %454, %455 : vector<4x32xf32>
    %457 = vector.extract_strided_slice %266 {offsets = [14, 0], sizes = [2, 96], strides = [1, 1]} : vector<16x96xf32> to vector<2x96xf32>
    %458 = vector.extract_strided_slice %267 {offsets = [0, 0], sizes = [2, 96], strides = [1, 1]} : vector<16x96xf32> to vector<2x96xf32>
    %459 = tpu.concatenate %457, %458 in 0 : vector<2x96xf32>, vector<2x96xf32> -> vector<4x96xf32>
    %460 = tpu.concatenate %456, %456 in 1 : vector<4x32xf32>, vector<4x32xf32> -> vector<4x64xf32>
    %461 = arith.mulf %460, %4 : vector<4x64xf32>
    %cst_92 = arith.constant dense<0.000000e+00> : vector<4x96xf32>
    %462 = tpu.matmul %461, %268, %cst_92 {dimension_numbers = #tpu.dot_dimension_numbers<[1], [0], [0], [1], [0, 0, 1, 1], [], []>} : vector<4x64xf32>, vector<64x96xf32>, vector<4x96xf32> -> vector<4x96xf32>
    %463 = vector.extract_strided_slice %459 {offsets = [0, 0], sizes = [4, 64], strides = [1, 1]} : vector<4x96xf32> to vector<4x64xf32>
    %464 = vector.extract_strided_slice %462 {offsets = [0, 0], sizes = [4, 64], strides = [1, 1]} : vector<4x96xf32> to vector<4x64xf32>
    %465 = arith.addf %463, %464 : vector<4x64xf32>
    %466 = arith.negf %465 : vector<4x64xf32>
    %467 = math.exp %466 : vector<4x64xf32>
    %cst_93 = arith.constant 1.000000e+00 : f32
    %468 = vector.broadcast %cst_93 : f32 to vector<4x64xf32>
    %469 = arith.addf %468, %467 : vector<4x64xf32>
    %470 = arith.divf %468, %469 : vector<4x64xf32>
    %471 = vector.extract_strided_slice %470 {offsets = [0, 0], sizes = [4, 32], strides = [1, 1]} : vector<4x64xf32> to vector<4x32xf32>
    %472 = vector.extract_strided_slice %470 {offsets = [0, 32], sizes = [4, 32], strides = [1, 1]} : vector<4x64xf32> to vector<4x32xf32>
    %473 = vector.extract_strided_slice %459 {offsets = [0, 64], sizes = [4, 32], strides = [1, 1]} : vector<4x96xf32> to vector<4x32xf32>
    %474 = vector.extract_strided_slice %462 {offsets = [0, 64], sizes = [4, 32], strides = [1, 1]} : vector<4x96xf32> to vector<4x32xf32>
    %475 = arith.addf %474, %275 : vector<4x32xf32>
    %476 = arith.mulf %471, %475 : vector<4x32xf32>
    %477 = arith.addf %473, %476 : vector<4x32xf32>
    %478 = math.tanh %477 : vector<4x32xf32>
    %cst_94 = arith.constant 1.000000e+00 : f32
    %479 = vector.broadcast %cst_94 : f32 to vector<4x32xf32>
    %480 = arith.subf %479, %472 : vector<4x32xf32>
    %481 = arith.mulf %480, %478 : vector<4x32xf32>
    %482 = arith.mulf %472, %456 : vector<4x32xf32>
    %483 = arith.addf %481, %482 : vector<4x32xf32>
    %484 = vector.extract_strided_slice %483 {offsets = [0, 0], sizes = [2, 32], strides = [1, 1]} : vector<4x32xf32> to vector<2x32xf32>
    %485 = tpu.concatenate %484, %294 in 1 : vector<2x32xf32>, vector<2x32xf32> -> vector<2x64xf32>
    %c0_95 = arith.constant 0 : index
    %c0_96 = arith.constant 0 : index
    %486 = vector.load %arg9[%c0_95, %c0_96] : memref<64x4xf32, #tpu.memory_space<vmem>>, vector<64x4xf32>
    %cst_97 = arith.constant dense<0.000000e+00> : vector<2x4xf32>
    %487 = tpu.matmul %485, %486, %cst_97 {dimension_numbers = #tpu.dot_dimension_numbers<[1], [0], [0], [1], [0, 0, 1, 1], [], []>} : vector<2x64xf32>, vector<64x4xf32>, vector<2x4xf32> -> vector<2x4xf32>
    %c0_98 = arith.constant 0 : index
    %c0_99 = arith.constant 0 : index
    %488 = vector.load %arg10[%c0_98, %c0_99] : memref<1x4xf32, #tpu.memory_space<vmem>>, vector<1x4xf32>
    %489 = vector.broadcast %488 : vector<1x4xf32> to vector<2x4xf32>
    %490 = arith.addf %487, %489 : vector<2x4xf32>
    %c0_100 = arith.constant 0 : index
    %c0_101 = arith.constant 0 : index
    %491 = vector.load %arg11[%c0_100, %c0_101] : memref<2x4xf32, #tpu.memory_space<vmem>>, vector<2x4xf32>
    tpu.vector_store %arg11[%c0_100, %c0_101], %490 {strides = array<i32>} : memref<2x4xf32, #tpu.memory_space<vmem>>, vector<2x4xf32>,
    return
  }
}

</mosaic_0001>

<llo_original>
// kernel: tpu_custom_call.1
$region0: #{tpu_custom_call.1}
  #allocation0 [shape = 'u32[]', space=smem, size = 0x4, offset = 0x4, fixed_abs, tag = 'smem constant byte address 0x4 - core index']
  #allocation1 [shape = 'u32[72,128]{1,0:T(1,128)}', space=vmem, size = 0x9000, scoped, tag = 'internal scratch']
  #allocation2 [shape = 'f32[16,64]{1,0:T(8,128)}', space=vmem, size = 0x2000, scoped, tag = 'scratch operand']
  %s0 = inlined_call_operand.vmem [shape: f32[16,8], index: 0, kind: input, shape index: {}]
  %s1 = inlined_call_operand.vmem [shape: f32[8,192], index: 1, kind: input, shape index: {}]
  %s2 = inlined_call_operand.vmem [shape: f32[64,96], index: 2, kind: input, shape index: {}]
  %s3 = inlined_call_operand.vmem [shape: f32[1,192], index: 3, kind: input, shape index: {}]
  %s4 = inlined_call_operand.vmem [shape: f32[2,32], index: 4, kind: input, shape index: {}]
  %s5 = inlined_call_operand.hbm [shape: f32[64,192], index: 5, kind: input, shape index: {}]
  %s6 = inlined_call_operand.hbm [shape: f32[64,96], index: 6, kind: input, shape index: {}]
  %s7 = inlined_call_operand.vmem [shape: f32[1,192], index: 7, kind: input, shape index: {}]
  %s8 = inlined_call_operand.vmem [shape: f32[2,32], index: 8, kind: input, shape index: {}]
  %s9 = inlined_call_operand.vmem [shape: f32[64,4], index: 9, kind: input, shape index: {}]
  %s10 = inlined_call_operand.vmem [shape: f32[1,4], index: 10, kind: input, shape index: {}]
  %s11 = inlined_call_operand.hbm [shape: f32[2,4], index: 11, kind: output, shape index: {}]
  %s12 = sld [smem:[#allocation0]]
  $region62: #{tpu_custom_call.1} parent=0
    _
  %s14 = ssub.s32 1, %s12
  %s15 = scalar_select 0, %s14, %s12
  $region1: #{tpu_custom_call.1} parent=0
    #allocation3 [shape = 'u8[65536]{0}', space=vmem, size = 0x10000, scoped, tag = 'input window, operand 5, single buffered']
    #allocation4 [shape = 's32[1]{0}', space=sflag, size = 0x4, scoped, tag = 'scoped memory for tpu_custom_call.1']
    #allocation5 [shape = 's32[1]{0}', space=sflag, size = 0x4, scoped, tag = 'scoped memory for tpu_custom_call.1']
    #allocation6 [shape = 'u8[32768]{0}', space=vmem, size = 0x8000, scoped, tag = 'input window, operand 6, single buffered']
    #allocation7 [shape = 's32[1]{0}', space=sflag, size = 0x4, scoped, tag = 'scoped memory for tpu_custom_call.1']
    #allocation8 [shape = 'u8[1024]{0}', space=vmem, size = 0x400, scoped, tag = 'output window, operand 0, single buffered']
    %16 = vsyncpa [#allocation4], 0
    %17 = vsyncpa [#allocation7], 0
    %18 = vsyncpa [#allocation5], 0
    // Predicated region
    $region2: #{tpu_custom_call.1} parent=1 // pred_check
      _
    $region3: #{tpu_custom_call.1} parent=1 // pred_check_branch
      %20 = sbr.rel (0) target = $region5
    $region4: #{tpu_custom_call.1} parent=1 // pred_region
      _
    $region5: #{tpu_custom_call.1} parent=1 // pred_fallthru
      _
    // Predicated region
    $region6: #{tpu_custom_call.1} parent=1 // pred_check
      _
    $region7: #{tpu_custom_call.1} parent=1 // pred_check_branch
      %22 = sbr.rel (0) target = $region9
    $region8: #{tpu_custom_call.1} parent=1 // pred_region
      _
    $region9: #{tpu_custom_call.1} parent=1 // pred_fallthru
      _
    // Predicated region
    $region10: #{tpu_custom_call.1} parent=1 // pred_check
      _
    $region11: #{tpu_custom_call.1} parent=1 // pred_check_branch
      %24 = sbr.rel (0) target = $region13
    $region12: #{tpu_custom_call.1} parent=1 // pred_region
      _
    $region13: #{tpu_custom_call.1} parent=1 // pred_fallthru
      _
    // Predicated region
    $region14: #{tpu_custom_call.1} parent=1 // pred_check
      _
    $region15: #{tpu_custom_call.1} parent=1 // pred_check_branch
      %26 = sbr.rel (0) target = $region17
    $region16: #{tpu_custom_call.1} parent=1 // pred_region
      _
    $region17: #{tpu_custom_call.1} parent=1 // pred_fallthru
      _
    // Predicated region
    $region18: #{tpu_custom_call.1} parent=1 // pred_check
      _
    $region19: #{tpu_custom_call.1} parent=1 // pred_check_branch
      %28 = sbr.rel (0) target = $region21
    $region20: #{tpu_custom_call.1} parent=1 // pred_region
      _
    $region21: #{tpu_custom_call.1} parent=1 // pred_fallthru
      _
    // Predicated region
    $region22: #{tpu_custom_call.1} parent=1 // pred_check
      _
    $region23: #{tpu_custom_call.1} parent=1 // pred_check_branch
      %30 = sbr.rel (0) target = $region25
    $region24: #{tpu_custom_call.1} parent=1 // pred_region
      %32 = vsyncadd [#allocation4], 0
      %s33 = sshll.u32 %s5, 4
      %s34 = int_to_ptr.hbm [resolvable:$true] %s33
      %s35 = sshll.u32 [#allocation3], 4
      %s36 = int_to_ptr.vmem [resolvable:$true] %s35
      %41 = dma.hbm_to_vmem [thread:$0]  %s34, 2048, %s36, [#allocation4], 256, 256, 16
    $region25: #{tpu_custom_call.1} parent=1 // pred_fallthru
      _
    // Predicated region
    $region26: #{tpu_custom_call.1} parent=1 // pred_check
      _
    $region27: #{tpu_custom_call.1} parent=1 // pred_check_branch
      %43 = sbr.rel (0) target = $region29
    $region28: #{tpu_custom_call.1} parent=1 // pred_region
      %45 = vsyncadd [#allocation7], 0
      %s46 = sshll.u32 %s6, 4
      %s47 = int_to_ptr.hbm [resolvable:$true] %s46
      %s48 = sshll.u32 [#allocation6], 4
      %s49 = int_to_ptr.vmem [resolvable:$true] %s48
      %54 = dma.hbm_to_vmem [thread:$0]  %s47, 1024, %s49, [#allocation7], 128, 128, 8
    $region29: #{tpu_custom_call.1} parent=1 // pred_fallthru
      _
    // Predicated region
    $region30: #{tpu_custom_call.1} parent=1 // pred_check
      _
    $region31: #{tpu_custom_call.1} parent=1 // pred_check_branch
      %56 = sbr.rel (0) target = $region33
    $region32: #{tpu_custom_call.1} parent=1 // pred_region
      _
    $region33: #{tpu_custom_call.1} parent=1 // pred_fallthru
      _
    // Predicated region
    $region34: #{tpu_custom_call.1} parent=1 // pred_check
      _
    $region35: #{tpu_custom_call.1} parent=1 // pred_check_branch
      %58 = sbr.rel (0) target = $region37
    $region36: #{tpu_custom_call.1} parent=1 // pred_region
      _
    $region37: #{tpu_custom_call.1} parent=1 // pred_fallthru
      _
    // Predicated region
    $region38: #{tpu_custom_call.1} parent=1 // pred_check
      _
    $region39: #{tpu_custom_call.1} parent=1 // pred_check_branch
      %60 = sbr.rel (0) target = $region41
    $region40: #{tpu_custom_call.1} parent=1 // pred_region
      _
    $region41: #{tpu_custom_call.1} parent=1 // pred_fallthru
      _
    // Predicated region
    $region42: #{tpu_custom_call.1} parent=1 // pred_check
      _
    $region43: #{tpu_custom_call.1} parent=1 // pred_check_branch
      %62 = sbr.rel (0) target = $region45
    $region44: #{tpu_custom_call.1} parent=1 // pred_region
      _
    $region45: #{tpu_custom_call.1} parent=1 // pred_fallthru
      _
    // Predicated region
    $region46: #{tpu_custom_call.1} parent=1 // pred_check
      _
    $region47: #{tpu_custom_call.1} parent=1 // pred_check_branch
      %64 = sbr.rel (0) target = $region49
    $region48: #{tpu_custom_call.1} parent=1 // pred_region
      %66 = dma.done [#allocation4], 2048
    $region49: #{tpu_custom_call.1} parent=1 // pred_fallthru
      _
    // Predicated region
    $region50: #{tpu_custom_call.1} parent=1 // pred_check
      _
    $region51: #{tpu_custom_call.1} parent=1 // pred_check_branch
      %68 = sbr.rel (0) target = $region53
    $region52: #{tpu_custom_call.1} parent=1 // pred_region
      %70 = dma.done [#allocation7], 1024
    $region53: #{tpu_custom_call.1} parent=1 // pred_fallthru
      _
    %vm71 = vcmask 261120
    %v72 = vsel %vm71, 1.0, 0.0
    %v73 = vsel %vm71, 0.0, 1.0
    %v75 = vrot.slane %v73, 6
    %vm77 = vcmask 1041408
    %v78 = vsel %vm77, %v72, %v75
    %v79 = vld [vmem:[%s0] sm:$0xff]
    %v80 = vld [vmem:[%s0 + $0x8] sm:$0xff]
    %v81 = vld [vmem:[%s1] sm:$0xff]
    %v82 = vld [vmem:[%s1 + $0x8] sm:$0xff]
    %v83 = vld [vmem:[%s3] sm:$0x3]
    %v85 = vperm.slane %v83, 0
    %v86 = vperm.slane %v83, 1
    %vm89 = vcmask 64512
    %v91 = vsel %vm89, %v79, 0
    %v94 = vsel %vm89, %v80, 0
    %96 = vmatpush.msra.mxu0 0.0
    %97 = vmatpush.msra.mxu0 0.0
    %98 = vmatpush.msra.mxu0 0.0
    %99 = vmatpush.msra.mxu0 0.0
    %100 = vmatpush.msra.mxu0 0.0
    %101 = vmatpush.msra.mxu0 0.0
    %102 = vmatpush.msra.mxu0 0.0
    %103 = vmatpush.msra.mxu0 0.0
    %104 = vmatpush.msra.mxu0 0.0
    %105 = vmatpush.msra.mxu0 0.0
    %106 = vmatpush.msra.mxu0 0.0
    %107 = vmatpush.msra.mxu0 0.0
    %108 = vmatpush.msra.mxu0 0.0
    %109 = vmatpush.msra.mxu0 0.0
    %110 = vmatpush.msra.mxu0 0.0
    %111 = vmatpush.msra.mxu0 %v81
    %112 = vmatmul.f32.gmra.mxu0 %v91
    %v113 = vpop.f32.mrf.mxu0
    %v114 = vadd.f32 %v85, %v113
    %115 = vmatmul.f32.gmra.mxu0 %v94
    %v116 = vpop.f32.mrf.mxu0
    %v117 = vadd.f32 %v85, %v116
    %118 = vdwg.mxu0
    %119 = vmatpush.msra.mxu0 0.0
    %120 = vmatpush.msra.mxu0 0.0
    %121 = vmatpush.msra.mxu0 0.0
    %122 = vmatpush.msra.mxu0 0.0
    %123 = vmatpush.msra.mxu0 0.0
    %124 = vmatpush.msra.mxu0 0.0
    %125 = vmatpush.msra.mxu0 0.0
    %126 = vmatpush.msra.mxu0 0.0
    %127 = vmatpush.msra.mxu0 0.0
    %128 = vmatpush.msra.mxu0 0.0
    %129 = vmatpush.msra.mxu0 0.0
    %130 = vmatpush.msra.mxu0 0.0
    %131 = vmatpush.msra.mxu0 0.0
    %132 = vmatpush.msra.mxu0 0.0
    %133 = vmatpush.msra.mxu0 0.0
    %134 = vmatpush.msra.mxu0 %v82
    %135 = vmatmul.f32.gmra.mxu0 %v91
    %v136 = vpop.f32.mrf.mxu0
    %v137 = vadd.f32 %v86, %v136
    %138 = vmatmul.f32.gmra.mxu0 %v94
    %v139 = vpop.f32.mrf.mxu0
    %v140 = vadd.f32 %v86, %v139
    %141 = vdwg.mxu0
    %v142 = vld [vmem:[%s2] sm:$0xff]
    %v143 = vld [vmem:[%s2 + $0x8] sm:$0xff]
    %v144 = vld [vmem:[%s2 + $0x10] sm:$0xff]
    %v145 = vld [vmem:[%s2 + $0x18] sm:$0xff]
    %v146 = vld [vmem:[%s2 + $0x20] sm:$0xff]
    %v147 = vld [vmem:[%s2 + $0x28] sm:$0xff]
    %v148 = vld [vmem:[%s2 + $0x30] sm:$0xff]
    %v149 = vld [vmem:[%s2 + $0x38] sm:$0xff]
    %v150 = vld [vmem:[%s4] sm:$0x1]
    %v151 = vperm.slane %v150, 0
    %v152 = vld [vmem:[%s4 + $0x1] sm:$0x1]
    %v153 = vperm.slane %v152, 0
    %v154 = vsel %vm77, %v151, %v153
    %v157 = vrot.slane %v117, 4
    %v158 = vrot.slane %v140, 4
    %159 = vrot.lane.b32.xlu0 %v157, 32
    %v160 = vpop.permute.xlu0 %159
    %161 = vrot.lane.b32.xlu0 %v158, 32
    %v162 = vpop.permute.xlu0 %161
    %v163 = vsel %vm71, %v160, %v162
    %v165 = vsel %vm77, %v114, %v163
    %v166 = vxor.u32 %v165, 2147483648
    %v167 = vmul.f32 %v166, 1.442695
    %v168 = vpow.pop %v167
    %v169 = vadd.f32 %v168, 1.0
    %v170 = vrcp.pop %v169
    %v171 = vmul.f32 %v169, %v170
    %v172 = vsub.f32 1.0, %v171
    %v173 = vmul.f32 %v170, %v172
    %v174 = vadd.f32 %v170, %v173
    %vm175 = vweird.f32 %v169
    %vm176 = vweird.f32 %v170
    %vm177 = vmor %vm175, %vm176
    %v178 = vsel %vm177, %v170, %v174
    %v179 = vand.u32 2147483647, %v169
    %vm180 = vcmp.eq.f32.partialorder %v179, 8.507059e+37
    %v181 = vand.u32 %v169, 2147483648
    %v182 = vor.u32 1.1754944e-38, %v181
    %v183 = vsel %vm180, %v182, %v178
    %v184 = vmul.f32 1.0, %v183
    %v185 = vmul.f32 %v184, %v154
    %187 = vrot.lane.b32.xlu0 %v185, 64
    %v188 = vpop.permute.xlu0 %187
    %v190 = vadd.f32 %v165, %v188
    %v191 = vtanh.pop %v190
    %v192 = vsub.f32 1.0, %v184
    %194 = vrot.lane.b32.xlu0 %v191, 96
    %v195 = vpop.permute.xlu0 %194
    %v197 = vmul.f32 %v192, %v195
    %199 = vrot.lane.b32.xlu0 %v197, 96
    %v200 = vpop.permute.xlu0 %199
    %vm202 = vcmask 254976
    %203 = vst.msk [vmem:[#allocation2] sm:$0x3] %vm202, %v200
    %vm204 = vcmask 519426
    %205 = vst.msk [vmem:[#allocation2 + $0xc] sm:$0xc] %vm204, %v197
    %v207 = vrot.slane %v114, 2
    %v209 = vrot.slane %v117, 2
    %v210 = vrot.slane %v140, 2
    %211 = vrot.lane.b32.xlu0 %v209, 32
    %v212 = vpop.permute.xlu0 %211
    %213 = vrot.lane.b32.xlu0 %v210, 32
    %v214 = vpop.permute.xlu0 %213
    %v215 = vsel %vm71, %v212, %v214
    %v217 = vsel %vm77, %v207, %v215
    %v218 = vsel %vm71, %v200, %v197
    %v219 = vmul.f32 %v218, %v78
    %vm220 = vcmask 523264
    %v222 = vsel %vm220, %v219, 0
    %224 = vmatpush.msra.mxu0 0.0
    %225 = vmatpush.msra.mxu0 0.0
    %226 = vmatpush.msra.mxu0 0.0
    %227 = vmatpush.msra.mxu0 0.0
    %228 = vmatpush.msra.mxu0 0.0
    %229 = vmatpush.msra.mxu0 0.0
    %230 = vmatpush.msra.mxu0 0.0
    %231 = vmatpush.msra.mxu0 0.0
    %232 = vmatpush.msra.mxu0 %v149
    %233 = vmatpush.msra.mxu0 %v148
    %234 = vmatpush.msra.mxu0 %v147
    %235 = vmatpush.msra.mxu0 %v146
    %236 = vmatpush.msra.mxu0 %v145
    %237 = vmatpush.msra.mxu0 %v144
    %238 = vmatpush.msra.mxu0 %v143
    %239 = vmatpush.msra.mxu0 %v142
    %240 = vmatmul.f32.gmra.mxu0 %v222
    %v241 = vpop.f32.mrf.mxu0
    %v242 = vadd.f32 0.0, %v241
    %243 = vdwg.mxu0
    %v244 = vadd.f32 %v217, %v242
    %v245 = vxor.u32 %v244, 2147483648
    %v246 = vmul.f32 %v245, 1.442695
    %v247 = vpow.pop %v246
    %v248 = vadd.f32 %v247, 1.0
    %v249 = vrcp.pop %v248
    %v250 = vmul.f32 %v248, %v249
    %v251 = vsub.f32 1.0, %v250
    %v252 = vmul.f32 %v249, %v251
    %v253 = vadd.f32 %v249, %v252
    %vm254 = vweird.f32 %v248
    %vm255 = vweird.f32 %v249
    %vm256 = vmor %vm254, %vm255
    %v257 = vsel %vm256, %v249, %v253
    %v258 = vand.u32 2147483647, %v248
    %vm259 = vcmp.eq.f32.partialorder %v258, 8.507059e+37
    %v260 = vand.u32 %v248, 2147483648
    %v261 = vor.u32 1.1754944e-38, %v260
    %v262 = vsel %vm259, %v261, %v257
    %v263 = vmul.f32 1.0, %v262
    %265 = vrot.lane.b32.xlu0 %v154, 64
    %v266 = vpop.permute.xlu0 %265
    %v268 = vadd.f32 %v242, %v266
    %270 = vrot.lane.b32.xlu0 %v268, 64
    %v271 = vpop.permute.xlu0 %270
    %v273 = vmul.f32 %v263, %v271
    %275 = vrot.lane.b32.xlu0 %v273, 64
    %v276 = vpop.permute.xlu0 %275
    %v278 = vadd.f32 %v217, %v276
    %v279 = vtanh.pop %v278
    %v280 = vsub.f32 1.0, %v263
    %282 = vrot.lane.b32.xlu0 %v279, 96
    %v283 = vpop.permute.xlu0 %282
    %v285 = vmul.f32 %v280, %v283
    %v286 = vmul.f32 %v263, %v197
    %v287 = vadd.f32 %v285, %v286
    %289 = vrot.lane.b32.xlu0 %v287, 96
    %v290 = vpop.permute.xlu0 %289
    %292 = vst.msk [vmem:[#allocation2 + $0x2] sm:$0x3] %vm202, %v290
    %293 = vst.msk [vmem:[#allocation2 + $0xa] sm:$0xc] %vm204, %v287
    %v294 = vrot.slane %v114, 4
    %296 = vrot.lane.b32.xlu0 %v117, 32
    %v297 = vpop.permute.xlu0 %296
    %298 = vrot.lane.b32.xlu0 %v140, 32
    %v299 = vpop.permute.xlu0 %298
    %v300 = vsel %vm71, %v297, %v299
    %v302 = vsel %vm77, %v294, %v300
    %v303 = vsel %vm71, %v290, %v287
    %v304 = vmul.f32 %v303, %v78
    %v306 = vsel %vm220, %v304, 0
    %308 = vmatpush.msra.mxu0 0.0
    %309 = vmatpush.msra.mxu0 0.0
    %310 = vmatpush.msra.mxu0 0.0
    %311 = vmatpush.msra.mxu0 0.0
    %312 = vmatpush.msra.mxu0 0.0
    %313 = vmatpush.msra.mxu0 0.0
    %314 = vmatpush.msra.mxu0 0.0
    %315 = vmatpush.msra.mxu0 0.0
    %316 = vmatpush.msra.mxu0 %v149
    %317 = vmatpush.msra.mxu0 %v148
    %318 = vmatpush.msra.mxu0 %v147
    %319 = vmatpush.msra.mxu0 %v146
    %320 = vmatpush.msra.mxu0 %v145
    %321 = vmatpush.msra.mxu0 %v144
    %322 = vmatpush.msra.mxu0 %v143
    %323 = vmatpush.msra.mxu0 %v142
    %324 = vmatmul.f32.gmra.mxu0 %v306
    %v325 = vpop.f32.mrf.mxu0
    %v326 = vadd.f32 0.0, %v325
    %327 = vdwg.mxu0
    %v328 = vadd.f32 %v302, %v326
    %v329 = vxor.u32 %v328, 2147483648
    %v330 = vmul.f32 %v329, 1.442695
    %v331 = vpow.pop %v330
    %v332 = vadd.f32 %v331, 1.0
    %v333 = vrcp.pop %v332
    %v334 = vmul.f32 %v332, %v333
    %v335 = vsub.f32 1.0, %v334
    %v336 = vmul.f32 %v333, %v335
    %v337 = vadd.f32 %v333, %v336
    %vm338 = vweird.f32 %v332
    %vm339 = vweird.f32 %v333
    %vm340 = vmor %vm338, %vm339
    %v341 = vsel %vm340, %v333, %v337
    %v342 = vand.u32 2147483647, %v332
    %vm343 = vcmp.eq.f32.partialorder %v342, 8.507059e+37
    %v344 = vand.u32 %v332, 2147483648
    %v345 = vor.u32 1.1754944e-38, %v344
    %v346 = vsel %vm343, %v345, %v341
    %v347 = vmul.f32 1.0, %v346
    %v348 = vadd.f32 %v326, %v266
    %350 = vrot.lane.b32.xlu0 %v348, 64
    %v351 = vpop.permute.xlu0 %350
    %v353 = vmul.f32 %v347, %v351
    %355 = vrot.lane.b32.xlu0 %v353, 64
    %v356 = vpop.permute.xlu0 %355
    %v358 = vadd.f32 %v302, %v356
    %v359 = vtanh.pop %v358
    %v360 = vsub.f32 1.0, %v347
    %362 = vrot.lane.b32.xlu0 %v359, 96
    %v363 = vpop.permute.xlu0 %362
    %v365 = vmul.f32 %v360, %v363
    %v366 = vmul.f32 %v347, %v287
    %v367 = vadd.f32 %v365, %v366
    %369 = vrot.lane.b32.xlu0 %v367, 96
    %v370 = vpop.permute.xlu0 %369
    %372 = vst.msk [vmem:[#allocation2 + $0x4] sm:$0x3] %vm202, %v370
    %373 = vst.msk [vmem:[#allocation2 + $0x8] sm:$0xc] %vm204, %v367
    %v374 = vrot.slane %v114, 6
    %v376 = vrot.slane %v117, 6
    %v377 = vrot.slane %v140, 6
    %378 = vrot.lane.b32.xlu0 %v376, 32
    %v379 = vpop.permute.xlu0 %378
    %380 = vrot.lane.b32.xlu0 %v377, 32
    %v381 = vpop.permute.xlu0 %380
    %v382 = vsel %vm71, %v379, %v381
    %v384 = vsel %vm77, %v374, %v382
    %v385 = vsel %vm71, %v370, %v367
    %v386 = vmul.f32 %v385, %v78
    %v388 = vsel %vm220, %v386, 0
    %390 = vmatpush.msra.mxu0 0.0
    %391 = vmatpush.msra.mxu0 0.0
    %392 = vmatpush.msra.mxu0 0.0
    %393 = vmatpush.msra.mxu0 0.0
    %394 = vmatpush.msra.mxu0 0.0
    %395 = vmatpush.msra.mxu0 0.0
    %396 = vmatpush.msra.mxu0 0.0
    %397 = vmatpush.msra.mxu0 0.0
    %398 = vmatpush.msra.mxu0 %v149
    %399 = vmatpush.msra.mxu0 %v148
    %400 = vmatpush.msra.mxu0 %v147
    %401 = vmatpush.msra.mxu0 %v146
    %402 = vmatpush.msra.mxu0 %v145
    %403 = vmatpush.msra.mxu0 %v144
    %404 = vmatpush.msra.mxu0 %v143
    %405 = vmatpush.msra.mxu0 %v142
    %406 = vmatmul.f32.gmra.mxu0 %v388
    %v407 = vpop.f32.mrf.mxu0
    %v408 = vadd.f32 0.0, %v407
    %409 = vdwg.mxu0
    %v410 = vadd.f32 %v384, %v408
    %v411 = vxor.u32 %v410, 2147483648
    %v412 = vmul.f32 %v411, 1.442695
    %v413 = vpow.pop %v412
    %v414 = vadd.f32 %v413, 1.0
    %v415 = vrcp.pop %v414
    %v416 = vmul.f32 %v414, %v415
    %v417 = vsub.f32 1.0, %v416
    %v418 = vmul.f32 %v415, %v417
    %v419 = vadd.f32 %v415, %v418
    %vm420 = vweird.f32 %v414
    %vm421 = vweird.f32 %v415
    %vm422 = vmor %vm420, %vm421
    %v423 = vsel %vm422, %v415, %v419
    %v424 = vand.u32 2147483647, %v414
    %vm425 = vcmp.eq.f32.partialorder %v424, 8.507059e+37
    %v426 = vand.u32 %v414, 2147483648
    %v427 = vor.u32 1.1754944e-38, %v426
    %v428 = vsel %vm425, %v427, %v423
    %v429 = vmul.f32 1.0, %v428
    %v430 = vadd.f32 %v408, %v266
    %432 = vrot.lane.b32.xlu0 %v430, 64
    %v433 = vpop.permute.xlu0 %432
    %v435 = vmul.f32 %v429, %v433
    %437 = vrot.lane.b32.xlu0 %v435, 64
    %v438 = vpop.permute.xlu0 %437
    %v440 = vadd.f32 %v384, %v438
    %v441 = vtanh.pop %v440
    %v442 = vsub.f32 1.0, %v429
    %444 = vrot.lane.b32.xlu0 %v441, 96
    %v445 = vpop.permute.xlu0 %444
    %v447 = vmul.f32 %v442, %v445
    %v448 = vmul.f32 %v429, %v367
    %v449 = vadd.f32 %v447, %v448
    %451 = vrot.lane.b32.xlu0 %v449, 96
    %v452 = vpop.permute.xlu0 %451
    %454 = vst.msk [vmem:[#allocation2 + $0x6] sm:$0x3] %vm202, %v452
    %455 = vst.msk [vmem:[#allocation2 + $0x6] sm:$0xc] %vm204, %v449
    %v457 = vrot.slane %v137, 4
    %458 = vrot.lane.b32.xlu0 %v294, 32
    %v459 = vpop.permute.xlu0 %458
    %460 = vrot.lane.b32.xlu0 %v457, 32
    %v461 = vpop.permute.xlu0 %460
    %v462 = vsel %vm71, %v459, %v461
    %v464 = vsel %vm77, %v117, %v462
    %v465 = vsel %vm71, %v452, %v449
    %v466 = vmul.f32 %v465, %v78
    %v468 = vsel %vm220, %v466, 0
    %470 = vmatpush.msra.mxu0 0.0
    %471 = vmatpush.msra.mxu0 0.0
    %472 = vmatpush.msra.mxu0 0.0
    %473 = vmatpush.msra.mxu0 0.0
    %474 = vmatpush.msra.mxu0 0.0
    %475 = vmatpush.msra.mxu0 0.0
    %476 = vmatpush.msra.mxu0 0.0
    %477 = vmatpush.msra.mxu0 0.0
    %478 = vmatpush.msra.mxu0 %v149
    %479 = vmatpush.msra.mxu0 %v148
    %480 = vmatpush.msra.mxu0 %v147
    %481 = vmatpush.msra.mxu0 %v146
    %482 = vmatpush.msra.mxu0 %v145
    %483 = vmatpush.msra.mxu0 %v144
    %484 = vmatpush.msra.mxu0 %v143
    %485 = vmatpush.msra.mxu0 %v142
    %486 = vmatmul.f32.gmra.mxu0 %v468
    %v487 = vpop.f32.mrf.mxu0
    %v488 = vadd.f32 0.0, %v487
    %489 = vdwg.mxu0
    %v490 = vadd.f32 %v464, %v488
    %v491 = vxor.u32 %v490, 2147483648
    %v492 = vmul.f32 %v491, 1.442695
    %v493 = vpow.pop %v492
    %v494 = vadd.f32 %v493, 1.0
    %v495 = vrcp.pop %v494
    %v496 = vmul.f32 %v494, %v495
    %v497 = vsub.f32 1.0, %v496
    %v498 = vmul.f32 %v495, %v497
    %v499 = vadd.f32 %v495, %v498
    %vm500 = vweird.f32 %v494
    %vm501 = vweird.f32 %v495
    %vm502 = vmor %vm500, %vm501
    %v503 = vsel %vm502, %v495, %v499
    %v504 = vand.u32 2147483647, %v494
    %vm505 = vcmp.eq.f32.partialorder %v504, 8.507059e+37
    %v506 = vand.u32 %v494, 2147483648
    %v507 = vor.u32 1.1754944e-38, %v506
    %v508 = vsel %vm505, %v507, %v503
    %v509 = vmul.f32 1.0, %v508
    %v510 = vadd.f32 %v488, %v266
    %512 = vrot.lane.b32.xlu0 %v510, 64
    %v513 = vpop.permute.xlu0 %512
    %v515 = vmul.f32 %v509, %v513
    %517 = vrot.lane.b32.xlu0 %v515, 64
    %v518 = vpop.permute.xlu0 %517
    %v520 = vadd.f32 %v464, %v518
    %v521 = vtanh.pop %v520
    %v522 = vsub.f32 1.0, %v509
    %524 = vrot.lane.b32.xlu0 %v521, 96
    %v525 = vpop.permute.xlu0 %524
    %v527 = vmul.f32 %v522, %v525
    %v528 = vmul.f32 %v509, %v449
    %v529 = vadd.f32 %v527, %v528
    %531 = vrot.lane.b32.xlu0 %v529, 96
    %v532 = vpop.permute.xlu0 %531
    %534 = vst.msk [vmem:[#allocation2 + $0x8] sm:$0x3] %vm202, %v532
    %535 = vst.msk [vmem:[#allocation2 + $0x4] sm:$0xc] %vm204, %v529
    %v537 = vrot.slane %v137, 2
    %538 = vrot.lane.b32.xlu0 %v207, 32
    %v539 = vpop.permute.xlu0 %538
    %540 = vrot.lane.b32.xlu0 %v537, 32
    %v541 = vpop.permute.xlu0 %540
    %v542 = vsel %vm71, %v539, %v541
    %v544 = vsel %vm77, %v209, %v542
    %v545 = vsel %vm71, %v532, %v529
    %v546 = vmul.f32 %v545, %v78
    %v548 = vsel %vm220, %v546, 0
    %550 = vmatpush.msra.mxu0 0.0
    %551 = vmatpush.msra.mxu0 0.0
    %552 = vmatpush.msra.mxu0 0.0
    %553 = vmatpush.msra.mxu0 0.0
    %554 = vmatpush.msra.mxu0 0.0
    %555 = vmatpush.msra.mxu0 0.0
    %556 = vmatpush.msra.mxu0 0.0
    %557 = vmatpush.msra.mxu0 0.0
    %558 = vmatpush.msra.mxu0 %v149
    %559 = vmatpush.msra.mxu0 %v148
    %560 = vmatpush.msra.mxu0 %v147
    %561 = vmatpush.msra.mxu0 %v146
    %562 = vmatpush.msra.mxu0 %v145
    %563 = vmatpush.msra.mxu0 %v144
    %564 = vmatpush.msra.mxu0 %v143
    %565 = vmatpush.msra.mxu0 %v142
    %566 = vmatmul.f32.gmra.mxu0 %v548
    %v567 = vpop.f32.mrf.mxu0
    %v568 = vadd.f32 0.0, %v567
    %569 = vdwg.mxu0
    %v570 = vadd.f32 %v544, %v568
    %v571 = vxor.u32 %v570, 2147483648
    %v572 = vmul.f32 %v571, 1.442695
    %v573 = vpow.pop %v572
    %v574 = vadd.f32 %v573, 1.0
    %v575 = vrcp.pop %v574
    %v576 = vmul.f32 %v574, %v575
    %v577 = vsub.f32 1.0, %v576
    %v578 = vmul.f32 %v575, %v577
    %v579 = vadd.f32 %v575, %v578
    %vm580 = vweird.f32 %v574
    %vm581 = vweird.f32 %v575
    %vm582 = vmor %vm580, %vm581
    %v583 = vsel %vm582, %v575, %v579
    %v584 = vand.u32 2147483647, %v574
    %vm585 = vcmp.eq.f32.partialorder %v584, 8.507059e+37
    %v586 = vand.u32 %v574, 2147483648
    %v587 = vor.u32 1.1754944e-38, %v586
    %v588 = vsel %vm585, %v587, %v583
    %v589 = vmul.f32 1.0, %v588
    %v590 = vadd.f32 %v568, %v266
    %592 = vrot.lane.b32.xlu0 %v590, 64
    %v593 = vpop.permute.xlu0 %592
    %v595 = vmul.f32 %v589, %v593
    %597 = vrot.lane.b32.xlu0 %v595, 64
    %v598 = vpop.permute.xlu0 %597
    %v600 = vadd.f32 %v544, %v598
    %v601 = vtanh.pop %v600
    %v602 = vsub.f32 1.0, %v589
    %604 = vrot.lane.b32.xlu0 %v601, 96
    %v605 = vpop.permute.xlu0 %604
    %v607 = vmul.f32 %v602, %v605
    %v608 = vmul.f32 %v589, %v529
    %v609 = vadd.f32 %v607, %v608
    %611 = vrot.lane.b32.xlu0 %v609, 96
    %v612 = vpop.permute.xlu0 %611
    %614 = vst.msk [vmem:[#allocation2 + $0xa] sm:$0x3] %vm202, %v612
    %615 = vst.msk [vmem:[#allocation2 + $0x2] sm:$0xc] %vm204, %v609
    %617 = vrot.lane.b32.xlu0 %v114, 32
    %v618 = vpop.permute.xlu0 %617
    %619 = vrot.lane.b32.xlu0 %v137, 32
    %v620 = vpop.permute.xlu0 %619
    %v621 = vsel %vm71, %v618, %v620
    %v623 = vsel %vm77, %v157, %v621
    %v624 = vsel %vm71, %v612, %v609
    %v625 = vmul.f32 %v624, %v78
    %v627 = vsel %vm220, %v625, 0
    %629 = vmatpush.msra.mxu0 0.0
    %630 = vmatpush.msra.mxu0 0.0
    %631 = vmatpush.msra.mxu0 0.0
    %632 = vmatpush.msra.mxu0 0.0
    %633 = vmatpush.msra.mxu0 0.0
    %634 = vmatpush.msra.mxu0 0.0
    %635 = vmatpush.msra.mxu0 0.0
    %636 = vmatpush.msra.mxu0 0.0
    %637 = vmatpush.msra.mxu0 %v149
    %638 = vmatpush.msra.mxu0 %v148
    %639 = vmatpush.msra.mxu0 %v147
    %640 = vmatpush.msra.mxu0 %v146
    %641 = vmatpush.msra.mxu0 %v145
    %642 = vmatpush.msra.mxu0 %v144
    %643 = vmatpush.msra.mxu0 %v143
    %644 = vmatpush.msra.mxu0 %v142
    %645 = vmatmul.f32.gmra.mxu0 %v627
    %v646 = vpop.f32.mrf.mxu0
    %v647 = vadd.f32 0.0, %v646
    %648 = vdwg.mxu0
    %v649 = vadd.f32 %v623, %v647
    %v650 = vxor.u32 %v649, 2147483648
    %v651 = vmul.f32 %v650, 1.442695
    %v652 = vpow.pop %v651
    %v653 = vadd.f32 %v652, 1.0
    %v654 = vrcp.pop %v653
    %v655 = vmul.f32 %v653, %v654
    %v656 = vsub.f32 1.0, %v655
    %v657 = vmul.f32 %v654, %v656
    %v658 = vadd.f32 %v654, %v657
    %vm659 = vweird.f32 %v653
    %vm660 = vweird.f32 %v654
    %vm661 = vmor %vm659, %vm660
    %v662 = vsel %vm661, %v654, %v658
    %v663 = vand.u32 2147483647, %v653
    %vm664 = vcmp.eq.f32.partialorder %v663, 8.507059e+37
    %v665 = vand.u32 %v653, 2147483648
    %v666 = vor.u32 1.1754944e-38, %v665
    %v667 = vsel %vm664, %v666, %v662
    %v668 = vmul.f32 1.0, %v667
    %v669 = vadd.f32 %v647, %v266
    %671 = vrot.lane.b32.xlu0 %v669, 64
    %v672 = vpop.permute.xlu0 %671
    %v674 = vmul.f32 %v668, %v672
    %676 = vrot.lane.b32.xlu0 %v674, 64
    %v677 = vpop.permute.xlu0 %676
    %v679 = vadd.f32 %v623, %v677
    %v680 = vtanh.pop %v679
    %v681 = vsub.f32 1.0, %v668
    %683 = vrot.lane.b32.xlu0 %v680, 96
    %v684 = vpop.permute.xlu0 %683
    %v686 = vmul.f32 %v681, %v684
    %v687 = vmul.f32 %v668, %v609
    %v688 = vadd.f32 %v686, %v687
    %690 = vrot.lane.b32.xlu0 %v688, 96
    %v691 = vpop.permute.xlu0 %690
    %693 = vst.msk [vmem:[#allocation2 + $0xc] sm:$0x3] %vm202, %v691
    %694 = vst.msk [vmem:[#allocation2] sm:$0xc] %vm204, %v688
    %v696 = vrot.slane %v137, 6
    %697 = vrot.lane.b32.xlu0 %v374, 32
    %v698 = vpop.permute.xlu0 %697
    %699 = vrot.lane.b32.xlu0 %v696, 32
    %v700 = vpop.permute.xlu0 %699
    %v701 = vsel %vm71, %v698, %v700
    %v703 = vsel %vm77, %v376, %v701
    %v704 = vsel %vm71, %v691, %v688
    %v705 = vmul.f32 %v704, %v78
    %v707 = vsel %vm220, %v705, 0
    %709 = vmatpush.msra.mxu0 0.0
    %710 = vmatpush.msra.mxu0 0.0
    %711 = vmatpush.msra.mxu0 0.0
    %712 = vmatpush.msra.mxu0 0.0
    %713 = vmatpush.msra.mxu0 0.0
    %714 = vmatpush.msra.mxu0 0.0
    %715 = vmatpush.msra.mxu0 0.0
    %716 = vmatpush.msra.mxu0 0.0
    %717 = vmatpush.msra.mxu0 %v149
    %718 = vmatpush.msra.mxu0 %v148
    %719 = vmatpush.msra.mxu0 %v147
    %720 = vmatpush.msra.mxu0 %v146
    %721 = vmatpush.msra.mxu0 %v145
    %722 = vmatpush.msra.mxu0 %v144
    %723 = vmatpush.msra.mxu0 %v143
    %724 = vmatpush.msra.mxu0 %v142
    %725 = vmatmul.f32.gmra.mxu0 %v707
    %v726 = vpop.f32.mrf.mxu0
    %v727 = vadd.f32 0.0, %v726
    %728 = vdwg.mxu0
    %v729 = vadd.f32 %v703, %v727
    %v730 = vxor.u32 %v729, 2147483648
    %v731 = vmul.f32 %v730, 1.442695
    %v732 = vpow.pop %v731
    %v733 = vadd.f32 %v732, 1.0
    %v734 = vrcp.pop %v733
    %v735 = vmul.f32 %v733, %v734
    %v736 = vsub.f32 1.0, %v735
    %v737 = vmul.f32 %v734, %v736
    %v738 = vadd.f32 %v734, %v737
    %vm739 = vweird.f32 %v733
    %vm740 = vweird.f32 %v734
    %vm741 = vmor %vm739, %vm740
    %v742 = vsel %vm741, %v734, %v738
    %v743 = vand.u32 2147483647, %v733
    %vm744 = vcmp.eq.f32.partialorder %v743, 8.507059e+37
    %v745 = vand.u32 %v733, 2147483648
    %v746 = vor.u32 1.1754944e-38, %v745
    %v747 = vsel %vm744, %v746, %v742
    %v748 = vmul.f32 1.0, %v747
    %v749 = vadd.f32 %v727, %v266
    %751 = vrot.lane.b32.xlu0 %v749, 64
    %v752 = vpop.permute.xlu0 %751
    %v754 = vmul.f32 %v748, %v752
    %756 = vrot.lane.b32.xlu0 %v754, 64
    %v757 = vpop.permute.xlu0 %756
    %v759 = vadd.f32 %v703, %v757
    %v760 = vtanh.pop %v759
    %v761 = vsub.f32 1.0, %v748
    %763 = vrot.lane.b32.xlu0 %v760, 96
    %v764 = vpop.permute.xlu0 %763
    %v766 = vmul.f32 %v761, %v764
    %v767 = vmul.f32 %v748, %v688
    %v768 = vadd.f32 %v766, %v767
    %770 = vrot.lane.b32.xlu0 %v768, 96
    %v771 = vpop.permute.xlu0 %770
    %773 = vst.msk [vmem:[#allocation2 + $0xe] sm:$0x3] %vm202, %v771
    %774 = vst.msk [vmem:[#allocation2 - $0x2] sm:$0xc] %vm204, %v768
    %v775 = vld [vmem:[#allocation2] sm:$0xff]
    %v776 = vld [vmem:[#allocation2 + $0x8] sm:$0xff]
    %v777 = vld [vmem:[#allocation3] sm:$0xff]
    %v778 = vld [vmem:[#allocation3 + $0x8] sm:$0xff]
    %v779 = vld [vmem:[#allocation3 + $0x10] sm:$0xff]
    %v780 = vld [vmem:[#allocation3 + $0x18] sm:$0xff]
    %v781 = vld [vmem:[#allocation3 + $0x20] sm:$0xff]
    %v782 = vld [vmem:[#allocation3 + $0x28] sm:$0xff]
    %v783 = vld [vmem:[#allocation3 + $0x30] sm:$0xff]
    %v784 = vld [vmem:[#allocation3 + $0x38] sm:$0xff]
    %v785 = vld [vmem:[#allocation3 + $0x40] sm:$0xff]
    %v786 = vld [vmem:[#allocation3 + $0x48] sm:$0xff]
    %v787 = vld [vmem:[#allocation3 + $0x50] sm:$0xff]
    %v788 = vld [vmem:[#allocation3 + $0x58] sm:$0xff]
    %v789 = vld [vmem:[#allocation3 + $0x60] sm:$0xff]
    %v790 = vld [vmem:[#allocation3 + $0x68] sm:$0xff]
    %v791 = vld [vmem:[#allocation3 + $0x70] sm:$0xff]
    %v792 = vld [vmem:[#allocation3 + $0x78] sm:$0xff]
    %v793 = vld [vmem:[%s7] sm:$0x3]
    %v795 = vperm.slane %v793, 0
    %v796 = vperm.slane %v793, 1
    %v800 = vsel %vm220, %v775, 0
    %v803 = vsel %vm220, %v776, 0
    %805 = vmatpush.msra.mxu0 0.0
    %806 = vmatpush.msra.mxu0 0.0
    %807 = vmatpush.msra.mxu0 0.0
    %808 = vmatpush.msra.mxu0 0.0
    %809 = vmatpush.msra.mxu0 0.0
    %810 = vmatpush.msra.mxu0 0.0
    %811 = vmatpush.msra.mxu0 0.0
    %812 = vmatpush.msra.mxu0 0.0
    %813 = vmatpush.msra.mxu0 %v791
    %814 = vmatpush.msra.mxu0 %v789
    %815 = vmatpush.msra.mxu0 %v787
    %816 = vmatpush.msra.mxu0 %v785
    %817 = vmatpush.msra.mxu0 %v783
    %818 = vmatpush.msra.mxu0 %v781
    %819 = vmatpush.msra.mxu0 %v779
    %820 = vmatpush.msra.mxu0 %v777
    %821 = vmatmul.f32.gmra.mxu0 %v800
    %v822 = vpop.f32.mrf.mxu0
    %v823 = vadd.f32 %v795, %v822
    %824 = vmatmul.f32.gmra.mxu0 %v803
    %v825 = vpop.f32.mrf.mxu0
    %v826 = vadd.f32 %v795, %v825
    %827 = vdwg.mxu0
    %828 = vmatpush.msra.mxu0 0.0
    %829 = vmatpush.msra.mxu0 0.0
    %830 = vmatpush.msra.mxu0 0.0
    %831 = vmatpush.msra.mxu0 0.0
    %832 = vmatpush.msra.mxu0 0.0
    %833 = vmatpush.msra.mxu0 0.0
    %834 = vmatpush.msra.mxu0 0.0
    %835 = vmatpush.msra.mxu0 0.0
    %836 = vmatpush.msra.mxu0 %v792
    %837 = vmatpush.msra.mxu0 %v790
    %838 = vmatpush.msra.mxu0 %v788
    %839 = vmatpush.msra.mxu0 %v786
    %840 = vmatpush.msra.mxu0 %v784
    %841 = vmatpush.msra.mxu0 %v782
    %842 = vmatpush.msra.mxu0 %v780
    %843 = vmatpush.msra.mxu0 %v778
    %844 = vmatmul.f32.gmra.mxu0 %v800
    %v845 = vpop.f32.mrf.mxu0
    %v846 = vadd.f32 %v796, %v845
    %847 = vmatmul.f32.gmra.mxu0 %v803
    %v848 = vpop.f32.mrf.mxu0
    %v849 = vadd.f32 %v796, %v848
    %850 = vdwg.mxu0
    %v851 = vld [vmem:[#allocation6] sm:$0xff]
    %v852 = vld [vmem:[#allocation6 + $0x8] sm:$0xff]
    %v853 = vld [vmem:[#allocation6 + $0x10] sm:$0xff]
    %v854 = vld [vmem:[#allocation6 + $0x18] sm:$0xff]
    %v855 = vld [vmem:[#allocation6 + $0x20] sm:$0xff]
    %v856 = vld [vmem:[#allocation6 + $0x28] sm:$0xff]
    %v857 = vld [vmem:[#allocation6 + $0x30] sm:$0xff]
    %v858 = vld [vmem:[#allocation6 + $0x38] sm:$0xff]
    %v859 = vld [vmem:[%s8] sm:$0x1]
    %v860 = vperm.slane %v859, 0
    %v861 = vld [vmem:[%s8 + $0x1] sm:$0x1]
    %v862 = vperm.slane %v861, 0
    %v863 = vsel %vm77, %v860, %v862
    %v866 = vrot.slane %v826, 4
    %v867 = vrot.slane %v849, 4
    %868 = vrot.lane.b32.xlu0 %v866, 32
    %v869 = vpop.permute.xlu0 %868
    %870 = vrot.lane.b32.xlu0 %v867, 32
    %v871 = vpop.permute.xlu0 %870
    %v872 = vsel %vm71, %v869, %v871
    %v874 = vsel %vm77, %v823, %v872
    %v875 = vxor.u32 %v874, 2147483648
    %v876 = vmul.f32 %v875, 1.442695
    %v877 = vpow.pop %v876
    %v878 = vadd.f32 %v877, 1.0
    %v879 = vrcp.pop %v878
    %v880 = vmul.f32 %v878, %v879
    %v881 = vsub.f32 1.0, %v880
    %v882 = vmul.f32 %v879, %v881
    %v883 = vadd.f32 %v879, %v882
    %vm884 = vweird.f32 %v878
    %vm885 = vweird.f32 %v879
    %vm886 = vmor %vm884, %vm885
    %v887 = vsel %vm886, %v879, %v883
    %v888 = vand.u32 2147483647, %v878
    %vm889 = vcmp.eq.f32.partialorder %v888, 8.507059e+37
    %v890 = vand.u32 %v878, 2147483648
    %v891 = vor.u32 1.1754944e-38, %v890
    %v892 = vsel %vm889, %v891, %v887
    %v893 = vmul.f32 1.0, %v892
    %v894 = vmul.f32 %v893, %v863
    %896 = vrot.lane.b32.xlu0 %v894, 64
    %v897 = vpop.permute.xlu0 %896
    %v899 = vadd.f32 %v874, %v897
    %v900 = vtanh.pop %v899
    %v901 = vsub.f32 1.0, %v893
    %903 = vrot.lane.b32.xlu0 %v900, 96
    %v904 = vpop.permute.xlu0 %903
    %v906 = vmul.f32 %v901, %v904
    %v908 = vrot.slane %v823, 2
    %v910 = vrot.slane %v826, 2
    %v911 = vrot.slane %v849, 2
    %912 = vrot.lane.b32.xlu0 %v910, 32
    %v913 = vpop.permute.xlu0 %912
    %914 = vrot.lane.b32.xlu0 %v911, 32
    %v915 = vpop.permute.xlu0 %914
    %v916 = vsel %vm71, %v913, %v915
    %v918 = vsel %vm77, %v908, %v916
    %920 = vrot.lane.b32.xlu0 %v906, 96
    %v921 = vpop.permute.xlu0 %920
    %v923 = vsel %vm71, %v921, %v906
    %v924 = vmul.f32 %v923, %v78
    %v926 = vsel %vm220, %v924, 0
    %928 = vmatpush.msra.mxu0 0.0
    %929 = vmatpush.msra.mxu0 0.0
    %930 = vmatpush.msra.mxu0 0.0
    %931 = vmatpush.msra.mxu0 0.0
    %932 = vmatpush.msra.mxu0 0.0
    %933 = vmatpush.msra.mxu0 0.0
    %934 = vmatpush.msra.mxu0 0.0
    %935 = vmatpush.msra.mxu0 0.0
    %936 = vmatpush.msra.mxu0 %v858
    %937 = vmatpush.msra.mxu0 %v857
    %938 = vmatpush.msra.mxu0 %v856
    %939 = vmatpush.msra.mxu0 %v855
    %940 = vmatpush.msra.mxu0 %v854
    %941 = vmatpush.msra.mxu0 %v853
    %942 = vmatpush.msra.mxu0 %v852
    %943 = vmatpush.msra.mxu0 %v851
    %944 = vmatmul.f32.gmra.mxu0 %v926
    %v945 = vpop.f32.mrf.mxu0
    %v946 = vadd.f32 0.0, %v945
    %947 = vdwg.mxu0
    %v948 = vadd.f32 %v918, %v946
    %v949 = vxor.u32 %v948, 2147483648
    %v950 = vmul.f32 %v949, 1.442695
    %v951 = vpow.pop %v950
    %v952 = vadd.f32 %v951, 1.0
    %v953 = vrcp.pop %v952
    %v954 = vmul.f32 %v952, %v953
    %v955 = vsub.f32 1.0, %v954
    %v956 = vmul.f32 %v953, %v955
    %v957 = vadd.f32 %v953, %v956
    %vm958 = vweird.f32 %v952
    %vm959 = vweird.f32 %v953
    %vm960 = vmor %vm958, %vm959
    %v961 = vsel %vm960, %v953, %v957
    %v962 = vand.u32 2147483647, %v952
    %vm963 = vcmp.eq.f32.partialorder %v962, 8.507059e+37
    %v964 = vand.u32 %v952, 2147483648
    %v965 = vor.u32 1.1754944e-38, %v964
    %v966 = vsel %vm963, %v965, %v961
    %v967 = vmul.f32 1.0, %v966
    %969 = vrot.lane.b32.xlu0 %v863, 64
    %v970 = vpop.permute.xlu0 %969
    %v972 = vadd.f32 %v946, %v970
    %974 = vrot.lane.b32.xlu0 %v972, 64
    %v975 = vpop.permute.xlu0 %974
    %v977 = vmul.f32 %v967, %v975
    %979 = vrot.lane.b32.xlu0 %v977, 64
    %v980 = vpop.permute.xlu0 %979
    %v982 = vadd.f32 %v918, %v980
    %v983 = vtanh.pop %v982
    %v984 = vsub.f32 1.0, %v967
    %986 = vrot.lane.b32.xlu0 %v983, 96
    %v987 = vpop.permute.xlu0 %986
    %v989 = vmul.f32 %v984, %v987
    %v990 = vmul.f32 %v967, %v906
    %v991 = vadd.f32 %v989, %v990
    %v992 = vrot.slane %v823, 4
    %994 = vrot.lane.b32.xlu0 %v826, 32
    %v995 = vpop.permute.xlu0 %994
    %996 = vrot.lane.b32.xlu0 %v849, 32
    %v997 = vpop.permute.xlu0 %996
    %v998 = vsel %vm71, %v995, %v997
    %v1000 = vsel %vm77, %v992, %v998
    %1002 = vrot.lane.b32.xlu0 %v991, 96
    %v1003 = vpop.permute.xlu0 %1002
    %v1005 = vsel %vm71, %v1003, %v991
    %v1006 = vmul.f32 %v1005, %v78
    %v1008 = vsel %vm220, %v1006, 0
    %1010 = vmatpush.msra.mxu0 0.0
    %1011 = vmatpush.msra.mxu0 0.0
    %1012 = vmatpush.msra.mxu0 0.0
    %1013 = vmatpush.msra.mxu0 0.0
    %1014 = vmatpush.msra.mxu0 0.0
    %1015 = vmatpush.msra.mxu0 0.0
    %1016 = vmatpush.msra.mxu0 0.0
    %1017 = vmatpush.msra.mxu0 0.0
    %1018 = vmatpush.msra.mxu0 %v858
    %1019 = vmatpush.msra.mxu0 %v857
    %1020 = vmatpush.msra.mxu0 %v856
    %1021 = vmatpush.msra.mxu0 %v855
    %1022 = vmatpush.msra.mxu0 %v854
    %1023 = vmatpush.msra.mxu0 %v853
    %1024 = vmatpush.msra.mxu0 %v852
    %1025 = vmatpush.msra.mxu0 %v851
    %1026 = vmatmul.f32.gmra.mxu0 %v1008
    %v1027 = vpop.f32.mrf.mxu0
    %v1028 = vadd.f32 0.0, %v1027
    %1029 = vdwg.mxu0
    %v1030 = vadd.f32 %v1000, %v1028
    %v1031 = vxor.u32 %v1030, 2147483648
    %v1032 = vmul.f32 %v1031, 1.442695
    %v1033 = vpow.pop %v1032
    %v1034 = vadd.f32 %v1033, 1.0
    %v1035 = vrcp.pop %v1034
    %v1036 = vmul.f32 %v1034, %v1035
    %v1037 = vsub.f32 1.0, %v1036
    %v1038 = vmul.f32 %v1035, %v1037
    %v1039 = vadd.f32 %v1035, %v1038
    %vm1040 = vweird.f32 %v1034
    %vm1041 = vweird.f32 %v1035
    %vm1042 = vmor %vm1040, %vm1041
    %v1043 = vsel %vm1042, %v1035, %v1039
    %v1044 = vand.u32 2147483647, %v1034
    %vm1045 = vcmp.eq.f32.partialorder %v1044, 8.507059e+37
    %v1046 = vand.u32 %v1034, 2147483648
    %v1047 = vor.u32 1.1754944e-38, %v1046
    %v1048 = vsel %vm1045, %v1047, %v1043
    %v1049 = vmul.f32 1.0, %v1048
    %v1050 = vadd.f32 %v1028, %v970
    %1052 = vrot.lane.b32.xlu0 %v1050, 64
    %v1053 = vpop.permute.xlu0 %1052
    %v1055 = vmul.f32 %v1049, %v1053
    %1057 = vrot.lane.b32.xlu0 %v1055, 64
    %v1058 = vpop.permute.xlu0 %1057
    %v1060 = vadd.f32 %v1000, %v1058
    %v1061 = vtanh.pop %v1060
    %v1062 = vsub.f32 1.0, %v1049
    %1064 = vrot.lane.b32.xlu0 %v1061, 96
    %v1065 = vpop.permute.xlu0 %1064
    %v1067 = vmul.f32 %v1062, %v1065
    %v1068 = vmul.f32 %v1049, %v991
    %v1069 = vadd.f32 %v1067, %v1068
    %v1070 = vrot.slane %v823, 6
    %v1072 = vrot.slane %v826, 6
    %v1073 = vrot.slane %v849, 6
    %1074 = vrot.lane.b32.xlu0 %v1072, 32
    %v1075 = vpop.permute.xlu0 %1074
    %1076 = vrot.lane.b32.xlu0 %v1073, 32
    %v1077 = vpop.permute.xlu0 %1076
    %v1078 = vsel %vm71, %v1075, %v1077
    %v1080 = vsel %vm77, %v1070, %v1078
    %1082 = vrot.lane.b32.xlu0 %v1069, 96
    %v1083 = vpop.permute.xlu0 %1082
    %v1085 = vsel %vm71, %v1083, %v1069
    %v1086 = vmul.f32 %v1085, %v78
    %v1088 = vsel %vm220, %v1086, 0
    %1090 = vmatpush.msra.mxu0 0.0
    %1091 = vmatpush.msra.mxu0 0.0
    %1092 = vmatpush.msra.mxu0 0.0
    %1093 = vmatpush.msra.mxu0 0.0
    %1094 = vmatpush.msra.mxu0 0.0
    %1095 = vmatpush.msra.mxu0 0.0
    %1096 = vmatpush.msra.mxu0 0.0
    %1097 = vmatpush.msra.mxu0 0.0
    %1098 = vmatpush.msra.mxu0 %v858
    %1099 = vmatpush.msra.mxu0 %v857
    %1100 = vmatpush.msra.mxu0 %v856
    %1101 = vmatpush.msra.mxu0 %v855
    %1102 = vmatpush.msra.mxu0 %v854
    %1103 = vmatpush.msra.mxu0 %v853
    %1104 = vmatpush.msra.mxu0 %v852
    %1105 = vmatpush.msra.mxu0 %v851
    %1106 = vmatmul.f32.gmra.mxu0 %v1088
    %v1107 = vpop.f32.mrf.mxu0
    %v1108 = vadd.f32 0.0, %v1107
    %1109 = vdwg.mxu0
    %v1110 = vadd.f32 %v1080, %v1108
    %v1111 = vxor.u32 %v1110, 2147483648
    %v1112 = vmul.f32 %v1111, 1.442695
    %v1113 = vpow.pop %v1112
    %v1114 = vadd.f32 %v1113, 1.0
    %v1115 = vrcp.pop %v1114
    %v1116 = vmul.f32 %v1114, %v1115
    %v1117 = vsub.f32 1.0, %v1116
    %v1118 = vmul.f32 %v1115, %v1117
    %v1119 = vadd.f32 %v1115, %v1118
    %vm1120 = vweird.f32 %v1114
    %vm1121 = vweird.f32 %v1115
    %vm1122 = vmor %vm1120, %vm1121
    %v1123 = vsel %vm1122, %v1115, %v1119
    %v1124 = vand.u32 2147483647, %v1114
    %vm1125 = vcmp.eq.f32.partialorder %v1124, 8.507059e+37
    %v1126 = vand.u32 %v1114, 2147483648
    %v1127 = vor.u32 1.1754944e-38, %v1126
    %v1128 = vsel %vm1125, %v1127, %v1123
    %v1129 = vmul.f32 1.0, %v1128
    %v1130 = vadd.f32 %v1108, %v970
    %1132 = vrot.lane.b32.xlu0 %v1130, 64
    %v1133 = vpop.permute.xlu0 %1132
    %v1135 = vmul.f32 %v1129, %v1133
    %1137 = vrot.lane.b32.xlu0 %v1135, 64
    %v1138 = vpop.permute.xlu0 %1137
    %v1140 = vadd.f32 %v1080, %v1138
    %v1141 = vtanh.pop %v1140
    %v1142 = vsub.f32 1.0, %v1129
    %1144 = vrot.lane.b32.xlu0 %v1141, 96
    %v1145 = vpop.permute.xlu0 %1144
    %v1147 = vmul.f32 %v1142, %v1145
    %v1148 = vmul.f32 %v1129, %v1069
    %v1149 = vadd.f32 %v1147, %v1148
    %v1151 = vrot.slane %v846, 4
    %1152 = vrot.lane.b32.xlu0 %v992, 32
    %v1153 = vpop.permute.xlu0 %1152
    %1154 = vrot.lane.b32.xlu0 %v1151, 32
    %v1155 = vpop.permute.xlu0 %1154
    %v1156 = vsel %vm71, %v1153, %v1155
    %v1158 = vsel %vm77, %v826, %v1156
    %1160 = vrot.lane.b32.xlu0 %v1149, 96
    %v1161 = vpop.permute.xlu0 %1160
    %v1163 = vsel %vm71, %v1161, %v1149
    %v1164 = vmul.f32 %v1163, %v78
    %v1166 = vsel %vm220, %v1164, 0
    %1168 = vmatpush.msra.mxu0 0.0
    %1169 = vmatpush.msra.mxu0 0.0
    %1170 = vmatpush.msra.mxu0 0.0
    %1171 = vmatpush.msra.mxu0 0.0
    %1172 = vmatpush.msra.mxu0 0.0
    %1173 = vmatpush.msra.mxu0 0.0
    %1174 = vmatpush.msra.mxu0 0.0
    %1175 = vmatpush.msra.mxu0 0.0
    %1176 = vmatpush.msra.mxu0 %v858
    %1177 = vmatpush.msra.mxu0 %v857
    %1178 = vmatpush.msra.mxu0 %v856
    %1179 = vmatpush.msra.mxu0 %v855
    %1180 = vmatpush.msra.mxu0 %v854
    %1181 = vmatpush.msra.mxu0 %v853
    %1182 = vmatpush.msra.mxu0 %v852
    %1183 = vmatpush.msra.mxu0 %v851
    %1184 = vmatmul.f32.gmra.mxu0 %v1166
    %v1185 = vpop.f32.mrf.mxu0
    %v1186 = vadd.f32 0.0, %v1185
    %1187 = vdwg.mxu0
    %v1188 = vadd.f32 %v1158, %v1186
    %v1189 = vxor.u32 %v1188, 2147483648
    %v1190 = vmul.f32 %v1189, 1.442695
    %v1191 = vpow.pop %v1190
    %v1192 = vadd.f32 %v1191, 1.0
    %v1193 = vrcp.pop %v1192
    %v1194 = vmul.f32 %v1192, %v1193
    %v1195 = vsub.f32 1.0, %v1194
    %v1196 = vmul.f32 %v1193, %v1195
    %v1197 = vadd.f32 %v1193, %v1196
    %vm1198 = vweird.f32 %v1192
    %vm1199 = vweird.f32 %v1193
    %vm1200 = vmor %vm1198, %vm1199
    %v1201 = vsel %vm1200, %v1193, %v1197
    %v1202 = vand.u32 2147483647, %v1192
    %vm1203 = vcmp.eq.f32.partialorder %v1202, 8.507059e+37
    %v1204 = vand.u32 %v1192, 2147483648
    %v1205 = vor.u32 1.1754944e-38, %v1204
    %v1206 = vsel %vm1203, %v1205, %v1201
    %v1207 = vmul.f32 1.0, %v1206
    %v1208 = vadd.f32 %v1186, %v970
    %1210 = vrot.lane.b32.xlu0 %v1208, 64
    %v1211 = vpop.permute.xlu0 %1210
    %v1213 = vmul.f32 %v1207, %v1211
    %1215 = vrot.lane.b32.xlu0 %v1213, 64
    %v1216 = vpop.permute.xlu0 %1215
    %v1218 = vadd.f32 %v1158, %v1216
    %v1219 = vtanh.pop %v1218
    %v1220 = vsub.f32 1.0, %v1207
    %1222 = vrot.lane.b32.xlu0 %v1219, 96
    %v1223 = vpop.permute.xlu0 %1222
    %v1225 = vmul.f32 %v1220, %v1223
    %v1226 = vmul.f32 %v1207, %v1149
    %v1227 = vadd.f32 %v1225, %v1226
    %v1229 = vrot.slane %v846, 2
    %1230 = vrot.lane.b32.xlu0 %v908, 32
    %v1231 = vpop.permute.xlu0 %1230
    %1232 = vrot.lane.b32.xlu0 %v1229, 32
    %v1233 = vpop.permute.xlu0 %1232
    %v1234 = vsel %vm71, %v1231, %v1233
    %v1236 = vsel %vm77, %v910, %v1234
    %1238 = vrot.lane.b32.xlu0 %v1227, 96
    %v1239 = vpop.permute.xlu0 %1238
    %v1241 = vsel %vm71, %v1239, %v1227
    %v1242 = vmul.f32 %v1241, %v78
    %v1244 = vsel %vm220, %v1242, 0
    %1246 = vmatpush.msra.mxu0 0.0
    %1247 = vmatpush.msra.mxu0 0.0
    %1248 = vmatpush.msra.mxu0 0.0
    %1249 = vmatpush.msra.mxu0 0.0
    %1250 = vmatpush.msra.mxu0 0.0
    %1251 = vmatpush.msra.mxu0 0.0
    %1252 = vmatpush.msra.mxu0 0.0
    %1253 = vmatpush.msra.mxu0 0.0
    %1254 = vmatpush.msra.mxu0 %v858
    %1255 = vmatpush.msra.mxu0 %v857
    %1256 = vmatpush.msra.mxu0 %v856
    %1257 = vmatpush.msra.mxu0 %v855
    %1258 = vmatpush.msra.mxu0 %v854
    %1259 = vmatpush.msra.mxu0 %v853
    %1260 = vmatpush.msra.mxu0 %v852
    %1261 = vmatpush.msra.mxu0 %v851
    %1262 = vmatmul.f32.gmra.mxu0 %v1244
    %v1263 = vpop.f32.mrf.mxu0
    %v1264 = vadd.f32 0.0, %v1263
    %1265 = vdwg.mxu0
    %v1266 = vadd.f32 %v1236, %v1264
    %v1267 = vxor.u32 %v1266, 2147483648
    %v1268 = vmul.f32 %v1267, 1.442695
    %v1269 = vpow.pop %v1268
    %v1270 = vadd.f32 %v1269, 1.0
    %v1271 = vrcp.pop %v1270
    %v1272 = vmul.f32 %v1270, %v1271
    %v1273 = vsub.f32 1.0, %v1272
    %v1274 = vmul.f32 %v1271, %v1273
    %v1275 = vadd.f32 %v1271, %v1274
    %vm1276 = vweird.f32 %v1270
    %vm1277 = vweird.f32 %v1271
    %vm1278 = vmor %vm1276, %vm1277
    %v1279 = vsel %vm1278, %v1271, %v1275
    %v1280 = vand.u32 2147483647, %v1270
    %vm1281 = vcmp.eq.f32.partialorder %v1280, 8.507059e+37
    %v1282 = vand.u32 %v1270, 2147483648
    %v1283 = vor.u32 1.1754944e-38, %v1282
    %v1284 = vsel %vm1281, %v1283, %v1279
    %v1285 = vmul.f32 1.0, %v1284
    %v1286 = vadd.f32 %v1264, %v970
    %1288 = vrot.lane.b32.xlu0 %v1286, 64
    %v1289 = vpop.permute.xlu0 %1288
    %v1291 = vmul.f32 %v1285, %v1289
    %1293 = vrot.lane.b32.xlu0 %v1291, 64
    %v1294 = vpop.permute.xlu0 %1293
    %v1296 = vadd.f32 %v1236, %v1294
    %v1297 = vtanh.pop %v1296
    %v1298 = vsub.f32 1.0, %v1285
    %1300 = vrot.lane.b32.xlu0 %v1297, 96
    %v1301 = vpop.permute.xlu0 %1300
    %v1303 = vmul.f32 %v1298, %v1301
    %v1304 = vmul.f32 %v1285, %v1227
    %v1305 = vadd.f32 %v1303, %v1304
    %1307 = vrot.lane.b32.xlu0 %v823, 32
    %v1308 = vpop.permute.xlu0 %1307
    %1309 = vrot.lane.b32.xlu0 %v846, 32
    %v1310 = vpop.permute.xlu0 %1309
    %v1311 = vsel %vm71, %v1308, %v1310
    %v1313 = vsel %vm77, %v866, %v1311
    %1315 = vrot.lane.b32.xlu0 %v1305, 96
    %v1316 = vpop.permute.xlu0 %1315
    %v1318 = vsel %vm71, %v1316, %v1305
    %v1319 = vmul.f32 %v1318, %v78
    %v1321 = vsel %vm220, %v1319, 0
    %1323 = vmatpush.msra.mxu0 0.0
    %1324 = vmatpush.msra.mxu0 0.0
    %1325 = vmatpush.msra.mxu0 0.0
    %1326 = vmatpush.msra.mxu0 0.0
    %1327 = vmatpush.msra.mxu0 0.0
    %1328 = vmatpush.msra.mxu0 0.0
    %1329 = vmatpush.msra.mxu0 0.0
    %1330 = vmatpush.msra.mxu0 0.0
    %1331 = vmatpush.msra.mxu0 %v858
    %1332 = vmatpush.msra.mxu0 %v857
    %1333 = vmatpush.msra.mxu0 %v856
    %1334 = vmatpush.msra.mxu0 %v855
    %1335 = vmatpush.msra.mxu0 %v854
    %1336 = vmatpush.msra.mxu0 %v853
    %1337 = vmatpush.msra.mxu0 %v852
    %1338 = vmatpush.msra.mxu0 %v851
    %1339 = vmatmul.f32.gmra.mxu0 %v1321
    %v1340 = vpop.f32.mrf.mxu0
    %v1341 = vadd.f32 0.0, %v1340
    %1342 = vdwg.mxu0
    %v1343 = vadd.f32 %v1313, %v1341
    %v1344 = vxor.u32 %v1343, 2147483648
    %v1345 = vmul.f32 %v1344, 1.442695
    %v1346 = vpow.pop %v1345
    %v1347 = vadd.f32 %v1346, 1.0
    %v1348 = vrcp.pop %v1347
    %v1349 = vmul.f32 %v1347, %v1348
    %v1350 = vsub.f32 1.0, %v1349
    %v1351 = vmul.f32 %v1348, %v1350
    %v1352 = vadd.f32 %v1348, %v1351
    %vm1353 = vweird.f32 %v1347
    %vm1354 = vweird.f32 %v1348
    %vm1355 = vmor %vm1353, %vm1354
    %v1356 = vsel %vm1355, %v1348, %v1352
    %v1357 = vand.u32 2147483647, %v1347
    %vm1358 = vcmp.eq.f32.partialorder %v1357, 8.507059e+37
    %v1359 = vand.u32 %v1347, 2147483648
    %v1360 = vor.u32 1.1754944e-38, %v1359
    %v1361 = vsel %vm1358, %v1360, %v1356
    %v1362 = vmul.f32 1.0, %v1361
    %v1363 = vadd.f32 %v1341, %v970
    %1365 = vrot.lane.b32.xlu0 %v1363, 64
    %v1366 = vpop.permute.xlu0 %1365
    %v1368 = vmul.f32 %v1362, %v1366
    %1370 = vrot.lane.b32.xlu0 %v1368, 64
    %v1371 = vpop.permute.xlu0 %1370
    %v1373 = vadd.f32 %v1313, %v1371
    %v1374 = vtanh.pop %v1373
    %v1375 = vsub.f32 1.0, %v1362
    %1377 = vrot.lane.b32.xlu0 %v1374, 96
    %v1378 = vpop.permute.xlu0 %1377
    %v1380 = vmul.f32 %v1375, %v1378
    %v1381 = vmul.f32 %v1362, %v1305
    %v1382 = vadd.f32 %v1380, %v1381
    %v1384 = vrot.slane %v846, 6
    %1385 = vrot.lane.b32.xlu0 %v1070, 32
    %v1386 = vpop.permute.xlu0 %1385
    %1387 = vrot.lane.b32.xlu0 %v1384, 32
    %v1388 = vpop.permute.xlu0 %1387
    %v1389 = vsel %vm71, %v1386, %v1388
    %v1391 = vsel %vm77, %v1072, %v1389
    %1393 = vrot.lane.b32.xlu0 %v1382, 96
    %v1394 = vpop.permute.xlu0 %1393
    %v1396 = vsel %vm71, %v1394, %v1382
    %v1397 = vmul.f32 %v1396, %v78
    %v1399 = vsel %vm220, %v1397, 0
    %1401 = vmatpush.msra.mxu0 0.0
    %1402 = vmatpush.msra.mxu0 0.0
    %1403 = vmatpush.msra.mxu0 0.0
    %1404 = vmatpush.msra.mxu0 0.0
    %1405 = vmatpush.msra.mxu0 0.0
    %1406 = vmatpush.msra.mxu0 0.0
    %1407 = vmatpush.msra.mxu0 0.0
    %1408 = vmatpush.msra.mxu0 0.0
    %1409 = vmatpush.msra.mxu0 %v858
    %1410 = vmatpush.msra.mxu0 %v857
    %1411 = vmatpush.msra.mxu0 %v856
    %1412 = vmatpush.msra.mxu0 %v855
    %1413 = vmatpush.msra.mxu0 %v854
    %1414 = vmatpush.msra.mxu0 %v853
    %1415 = vmatpush.msra.mxu0 %v852
    %1416 = vmatpush.msra.mxu0 %v851
    %1417 = vmatmul.f32.gmra.mxu0 %v1399
    %v1418 = vpop.f32.mrf.mxu0
    %v1419 = vadd.f32 0.0, %v1418
    %1420 = vdwg.mxu0
    %v1421 = vadd.f32 %v1391, %v1419
    %v1422 = vxor.u32 %v1421, 2147483648
    %v1423 = vmul.f32 %v1422, 1.442695
    %v1424 = vpow.pop %v1423
    %v1425 = vadd.f32 %v1424, 1.0
    %v1426 = vrcp.pop %v1425
    %v1427 = vmul.f32 %v1425, %v1426
    %v1428 = vsub.f32 1.0, %v1427
    %v1429 = vmul.f32 %v1426, %v1428
    %v1430 = vadd.f32 %v1426, %v1429
    %vm1431 = vweird.f32 %v1425
    %vm1432 = vweird.f32 %v1426
    %vm1433 = vmor %vm1431, %vm1432
    %v1434 = vsel %vm1433, %v1426, %v1430
    %v1435 = vand.u32 2147483647, %v1425
    %vm1436 = vcmp.eq.f32.partialorder %v1435, 8.507059e+37
    %v1437 = vand.u32 %v1425, 2147483648
    %v1438 = vor.u32 1.1754944e-38, %v1437
    %v1439 = vsel %vm1436, %v1438, %v1434
    %v1440 = vmul.f32 1.0, %v1439
    %v1441 = vadd.f32 %v1419, %v970
    %1443 = vrot.lane.b32.xlu0 %v1441, 64
    %v1444 = vpop.permute.xlu0 %1443
    %v1446 = vmul.f32 %v1440, %v1444
    %1448 = vrot.lane.b32.xlu0 %v1446, 64
    %v1449 = vpop.permute.xlu0 %1448
    %v1451 = vadd.f32 %v1391, %v1449
    %v1452 = vtanh.pop %v1451
    %v1453 = vsub.f32 1.0, %v1440
    %1455 = vrot.lane.b32.xlu0 %v1452, 96
    %v1456 = vpop.permute.xlu0 %1455
    %v1458 = vmul.f32 %v1453, %v1456
    %v1459 = vmul.f32 %v1440, %v1382
    %v1460 = vadd.f32 %v1458, %v1459
    %1462 = vrot.lane.b32.xlu0 %v1460, 96
    %v1463 = vpop.permute.xlu0 %1462
    %v1465 = vrot.slane %v906, 2
    %v1467 = vsel %vm71, %v1463, %v1465
    %v1468 = vld [vmem:[%s9] sm:$0xff]
    %v1469 = vld [vmem:[%s9 + $0x8] sm:$0xff]
    %v1470 = vld [vmem:[%s9 + $0x10] sm:$0xff]
    %v1471 = vld [vmem:[%s9 + $0x18] sm:$0xff]
    %v1472 = vld [vmem:[%s9 + $0x20] sm:$0xff]
    %v1473 = vld [vmem:[%s9 + $0x28] sm:$0xff]
    %v1474 = vld [vmem:[%s9 + $0x30] sm:$0xff]
    %v1475 = vld [vmem:[%s9 + $0x38] sm:$0xff]
    %v1476 = vld [vmem:[%s10] sm:$0x1]
    %v1478 = vperm.slane %v1476, 0
    %v1481 = vsel %vm220, %v1467, 0
    %1483 = vmatpush.msra.mxu0 0.0
    %1484 = vmatpush.msra.mxu0 0.0
    %1485 = vmatpush.msra.mxu0 0.0
    %1486 = vmatpush.msra.mxu0 0.0
    %1487 = vmatpush.msra.mxu0 0.0
    %1488 = vmatpush.msra.mxu0 0.0
    %1489 = vmatpush.msra.mxu0 0.0
    %1490 = vmatpush.msra.mxu0 0.0
    %1491 = vmatpush.msra.mxu0 %v1475
    %1492 = vmatpush.msra.mxu0 %v1474
    %1493 = vmatpush.msra.mxu0 %v1473
    %1494 = vmatpush.msra.mxu0 %v1472
    %1495 = vmatpush.msra.mxu0 %v1471
    %1496 = vmatpush.msra.mxu0 %v1470
    %1497 = vmatpush.msra.mxu0 %v1469
    %1498 = vmatpush.msra.mxu0 %v1468
    %1499 = vmatmul.f32.gmra.mxu0 %v1481
    %v1500 = vpop.f32.mrf.mxu0
    %v1501 = vadd.f32 %v1478, %v1500
    %1502 = vdwg.mxu0
    %vm1503 = vcmask 25600
    %1504 = vst.msk [vmem:[#allocation8] sm:$0x3] %vm1503, %v1501
    // Predicated region
    $region54: #{tpu_custom_call.1} parent=1 // pred_check
      _
    $region55: #{tpu_custom_call.1} parent=1 // pred_check_branch
      %1506 = sbr.rel (0) target = $region57
    $region56: #{tpu_custom_call.1} parent=1 // pred_region
      %1508 = vsyncadd [#allocation5], 0
      %s1510 = sshll.u32 [#allocation8], 4
      %s1511 = int_to_ptr.vmem [resolvable:$true] %s1510
      %s1512 = sshll.u32 %s11, 4
      %s1513 = int_to_ptr.hbm [resolvable:$true] %s1512
      %1515 = dma.vmem_to_hbm [thread:$0]  %s1511, 32, %s1513, [#allocation5]
    $region57: #{tpu_custom_call.1} parent=1 // pred_fallthru
      _
    // Predicated region
    $region58: #{tpu_custom_call.1} parent=1 // pred_check
      _
    $region59: #{tpu_custom_call.1} parent=1 // pred_check_branch
      %1517 = sbr.rel (0) target = $region61
    $region60: #{tpu_custom_call.1} parent=1 // pred_region
      %1519 = dma.done [#allocation5], 32
    $region61: #{tpu_custom_call.1} parent=1 // pred_fallthru
      _
    %1520 = vsyncpa [#allocation4], 1
    %1521 = vsyncpa [#allocation7], 1
    %1522 = vsyncpa [#allocation5], 1

</llo_original>
